<compile_context>
chip_gen: v7x
topology: tpu7x:2x2x1
jax: 0.10.0
libtpu: 0.0.40
codegen_flags: <defaults>
</compile_context>

<pallas_src>
import math

import jax
import jax.numpy as jnp
from jax.experimental import pallas as pl
from jax.experimental.pallas import tpu as pltpu


def _pca_ae_kernel(x_ref, w1t_ref, b1_ref, w2t_ref, b2_ref, o_ref):
    # x_ref  : (TB, F)  f32/bf16  input tile (normalization folded into weights)
    # w1t_ref: (F, Kp)  bf16      (w1 / std).T, zero-padded ncomp -> Kp lanes
    # b1_ref : (1, Kp)  f32       b1 - w1 @ (mean / std), zero-padded
    # w2t_ref: (Kp, F)  bf16      (w2 * std[:, None]).T, zero-padded rows
    # b2_ref : (1, F)   f32       b2 * std + mean
    # o_ref  : (TB, F)            output tile (caller-chosen dtype)
    x = x_ref[...].astype(jnp.bfloat16)          # VPU cast; x streams in f32
    # encode: (TB, F) @ (F, Kp) -> (TB, Kp)   [MXU, f32 accumulate]
    z = jnp.dot(x, w1t_ref[...],
                preferred_element_type=jnp.float32) + b1_ref[...]
    # decode: (TB, Kp) @ (Kp, F) -> (TB, F)   [MXU, f32 accumulate]
    y = jnp.dot(z.astype(w2t_ref.dtype), w2t_ref[...],
                preferred_element_type=jnp.float32)
    o_ref[...] = (y + b2_ref[...]).astype(o_ref.dtype)


def _round_up(v, m):
    return ((v + m - 1) // m) * m


def prepare_pca_autoencoder_params(mean, std, w1, b1, w2, b2):
    """One-time (model-load) prep: fold normalization into the two linears,
    pre-transpose, zero-pad ncomp -> Kp (lane width), cast streamed weights to
    bf16. Hoisted out of the per-call path per the performance review."""
    ncomp, F = w1.shape
    Kp = max(128, _round_up(ncomp, 128))

    mean = mean.astype(jnp.float32)
    std = std.astype(jnp.float32)
    inv_std = 1.0 / std                          # multiply, never divide in-kernel

    w1f = w1.astype(jnp.float32) * inv_std[None, :]                    # (ncomp, F)
    b1f = b1.astype(jnp.float32) - w1.astype(jnp.float32) @ (mean * inv_std)
    w2f = w2.astype(jnp.float32) * std[:, None]                        # (F, ncomp)
    b2f = b2.astype(jnp.float32) * std + mean                          # (F,)

    w1t = jnp.zeros((F, Kp), jnp.bfloat16).at[:, :ncomp].set(
        w1f.T.astype(jnp.bfloat16))
    b1p = jnp.zeros((1, Kp), jnp.float32).at[:, :ncomp].set(b1f[None, :])
    w2t = jnp.zeros((Kp, F), jnp.bfloat16).at[:ncomp, :].set(
        w2f.T.astype(jnp.bfloat16))
    b2p = b2f.reshape(1, F)
    return w1t, b1p, w2t, b2p


def pca_autoencoder_forward(x, params, shape, *, block_b=512, out_dtype=None):
    """x: (B, *shape). params: output of prepare_pca_autoencoder_params.
    Returns (B, *shape). out_dtype defaults to x.dtype (keeps module
    semantics); pass jnp.bfloat16 to halve writeback bytes if the consumer
    tolerates the precision tradeoff."""
    w1t, b1p, w2t, b2p = params
    B = x.shape[0]
    F = math.prod(shape)
    Kp = w1t.shape[1]
    if out_dtype is None:
        out_dtype = x.dtype

    x_flat = x.reshape(B, F)                     # no cast: stream native dtype

    # Batch tiling: guarantee >= 2 grid steps when B > 8 so the "parallel"
    # axis can be split across v7x's two TensorCores; keep blocks sublane-
    # aligned (multiple of 8) unless the block is the full batch extent.
    if B <= 8:
        TB = B                                   # single full-extent block
    else:
        TB = min(block_b, _round_up(pl.cdiv(B, 2), 8))
    grid = (pl.cdiv(B, TB),)

    x_bytes = jnp.dtype(x_flat.dtype).itemsize
    o_bytes = jnp.dtype(out_dtype).itemsize
    cost = pl.CostEstimate(
        flops=4 * B * F * Kp,
        transcendentals=0,
        bytes_accessed=(B * F * (x_bytes + o_bytes)
                        + 2 * F * Kp * 2            # bf16 weights
                        + (F + Kp) * 4),            # f32 biases
    )

    def _call(resident_pipeline_mode):
        res_kw = ({} if resident_pipeline_mode is None
                  else dict(pipeline_mode=resident_pipeline_mode))
        return pl.pallas_call(
            _pca_ae_kernel,
            out_shape=jax.ShapeDtypeStruct((B, F), out_dtype),
            grid=grid,
            in_specs=[
                pl.BlockSpec((TB, F), lambda i: (i, 0)),             # x streamed
                pl.BlockSpec((F, Kp), lambda i: (0, 0), **res_kw),   # W1'^T resident
                pl.BlockSpec((1, Kp), lambda i: (0, 0), **res_kw),   # b1'   resident
                pl.BlockSpec((Kp, F), lambda i: (0, 0), **res_kw),   # W2'^T resident
                pl.BlockSpec((1, F), lambda i: (0, 0), **res_kw),    # b2'   resident
            ],
            out_specs=pl.BlockSpec((TB, F), lambda i: (i, 0)),
            compiler_params=pltpu.CompilerParams(
                dimension_semantics=("parallel",)),
            cost_estimate=cost,
        )(x_flat, w1t, b1p, w2t, b2p)

    try:
        # Resident operands never change across the grid -> single buffer
        # (saves the never-refilled second VMEM copy of the weights).
        out_flat = _call(pl.Buffered(1))
    except Exception:
        # Fallback if this jax build rejects pipeline_mode on TPU pallas_call.
        out_flat = _call(None)

    return out_flat.reshape(B, *shape)


if __name__ == "__main__":
    # Small shapes consistent with the module: shape=(4, 16, 16), ncomp=32, B=2
    B = 2
    shape = (4, 16, 16)
    F = math.prod(shape)     # 1024
    ncomp = 32

    key = jax.random.PRNGKey(0)
    kx, km, ks, kw1, kb1, kw2, kb2 = jax.random.split(key, 7)

    x = jax.random.normal(kx, (B, *shape), dtype=jnp.float32)
    mean = jax.random.normal(km, (F,), dtype=jnp.float32) * 0.1
    std = jax.random.uniform(ks, (F,), dtype=jnp.float32, minval=0.5, maxval=1.5)

    # nn.Linear-style init: U(-1/sqrt(fan_in), 1/sqrt(fan_in)), deterministic.
    lim1 = 1.0 / jnp.sqrt(F)
    w1 = jax.random.uniform(kw1, (ncomp, F), jnp.float32, -lim1, lim1)
    b1 = jax.random.uniform(kb1, (ncomp,), jnp.float32, -lim1, lim1)
    lim2 = 1.0 / jnp.sqrt(ncomp)
    w2 = jax.random.uniform(kw2, (F, ncomp), jnp.float32, -lim2, lim2)
    b2 = jax.random.uniform(kb2, (F,), jnp.float32, -lim2, lim2)

    # One-time weight prep (model-load time), then the streaming forward.
    params = prepare_pca_autoencoder_params(mean, std, w1, b1, w2, b2)
    out = pca_autoencoder_forward(x, params, shape)
    out = jax.block_until_ready(out)

    # Reference check in plain f32 JAX (same math as the PyTorch forward).
    # Tighter tolerance than before: x streams in f32, only weights are bf16,
    # accumulation is f32.
    xn = (x.reshape(B, F) - mean) / std
    ref = ((xn @ w1.T + b1) @ w2.T + b2) * std + mean
    ref = ref.reshape(B, *shape)
    assert out.shape == (B, *shape)
    assert out.dtype == x.dtype
    assert jnp.allclose(out, ref, atol=2e-2, rtol=2e-2), (
        f"max abs err {jnp.max(jnp.abs(out - ref))}")

    print("KERNEL_OK")
</pallas_src>

<mosaic_0001>
module attributes {stable_mosaic.version = 11 : i64} {
  func.func @_pca_ae_kernel(%arg0: i32, %arg1: memref<2x1024xf32, #tpu.memory_space<vmem>>, %arg2: memref<1024x128xbf16, #tpu.memory_space<vmem>>, %arg3: memref<1x128xf32, #tpu.memory_space<vmem>>, %arg4: memref<128x1024xbf16, #tpu.memory_space<vmem>>, %arg5: memref<1x1024xf32, #tpu.memory_space<vmem>>, %arg6: memref<2x1024xf32, #tpu.memory_space<vmem>>) attributes {dimension_semantics = [#tpu.dimension_semantics<parallel>], iteration_bounds = array<i64: 1>, scalar_prefetch = 0 : i64, scratch_operands = 0 : i64, tpu.core_type = #tpu.core_type<tc>, window_params = [{transform_indices = @transform_0, window_bounds = array<i64: 2, 1024>}, {pipeline_mode = #tpu.pipeline_mode<synchronous>, transform_indices = @transform_1, window_bounds = array<i64: 1024, 128>}, {pipeline_mode = #tpu.pipeline_mode<synchronous>, transform_indices = @transform_2, window_bounds = array<i64: 1, 128>}, {pipeline_mode = #tpu.pipeline_mode<synchronous>, transform_indices = @transform_3, window_bounds = array<i64: 128, 1024>}, {pipeline_mode = #tpu.pipeline_mode<synchronous>, transform_indices = @transform_4, window_bounds = array<i64: 1, 1024>}, {transform_indices = @transform_5, window_bounds = array<i64: 2, 1024>}]} {
    %c0 = arith.constant 0 : index
    %c0_0 = arith.constant 0 : index
    %0 = vector.load %arg1[%c0, %c0_0] : memref<2x1024xf32, #tpu.memory_space<vmem>>, vector<2x1024xf32>
    %1 = arith.truncf %0 : vector<2x1024xf32> to vector<2x1024xbf16>
    %c0_1 = arith.constant 0 : index
    %c0_2 = arith.constant 0 : index
    %2 = vector.load %arg2[%c0_1, %c0_2] : memref<1024x128xbf16, #tpu.memory_space<vmem>>, vector<1024x128xbf16>
    %cst = arith.constant dense<0.000000e+00> : vector<2x128xf32>
    %3 = tpu.matmul %1, %2, %cst {dimension_numbers = #tpu.dot_dimension_numbers<[1], [0], [0], [1], [0, 0, 1, 1], [], []>} : vector<2x1024xbf16>, vector<1024x128xbf16>, vector<2x128xf32> -> vector<2x128xf32>
    %c0_3 = arith.constant 0 : index
    %c0_4 = arith.constant 0 : index
    %4 = vector.load %arg3[%c0_3, %c0_4] : memref<1x128xf32, #tpu.memory_space<vmem>>, vector<1x128xf32>
    %5 = vector.broadcast %4 : vector<1x128xf32> to vector<2x128xf32>
    %6 = arith.addf %3, %5 : vector<2x128xf32>
    %7 = arith.truncf %6 : vector<2x128xf32> to vector<2x128xbf16>
    %c0_5 = arith.constant 0 : index
    %c0_6 = arith.constant 0 : index
    %8 = vector.load %arg4[%c0_5, %c0_6] : memref<128x1024xbf16, #tpu.memory_space<vmem>>, vector<128x1024xbf16>
    %cst_7 = arith.constant dense<0.000000e+00> : vector<2x1024xf32>
    %9 = tpu.matmul %7, %8, %cst_7 {dimension_numbers = #tpu.dot_dimension_numbers<[1], [0], [0], [1], [0, 0, 1, 1], [], []>} : vector<2x128xbf16>, vector<128x1024xbf16>, vector<2x1024xf32> -> vector<2x1024xf32>
    %c0_8 = arith.constant 0 : index
    %c0_9 = arith.constant 0 : index
    %10 = vector.load %arg5[%c0_8, %c0_9] : memref<1x1024xf32, #tpu.memory_space<vmem>>, vector<1x1024xf32>
    %11 = vector.broadcast %10 : vector<1x1024xf32> to vector<2x1024xf32>
    %12 = arith.addf %9, %11 : vector<2x1024xf32>
    %c0_10 = arith.constant 0 : index
    %c0_11 = arith.constant 0 : index
    %13 = vector.load %arg6[%c0_10, %c0_11] : memref<2x1024xf32, #tpu.memory_space<vmem>>, vector<2x1024xf32>
    tpu.vector_store %arg6[%c0_10, %c0_11], %12 {strides = array<i32>} : memref<2x1024xf32, #tpu.memory_space<vmem>>, vector<2x1024xf32>,
    return
  }
  func.func @transform_0(%arg0: i32) -> (i32, i32) {
    %c0_i32 = arith.constant 0 : i32
    %c0_i32_0 = arith.constant 0 : i32
    return %arg0, %c0_i32 : i32, i32
  }
  func.func @transform_1(%arg0: i32) -> (i32, i32) {
    %c0_i32 = arith.constant 0 : i32
    %c0_i32_0 = arith.constant 0 : i32
    %c0_i32_1 = arith.constant 0 : i32
    return %c0_i32, %c0_i32_0 : i32, i32
  }
  func.func @transform_2(%arg0: i32) -> (i32, i32) {
    %c0_i32 = arith.constant 0 : i32
    %c0_i32_0 = arith.constant 0 : i32
    %c0_i32_1 = arith.constant 0 : i32
    return %c0_i32, %c0_i32_0 : i32, i32
  }
  func.func @transform_3(%arg0: i32) -> (i32, i32) {
    %c0_i32 = arith.constant 0 : i32
    %c0_i32_0 = arith.constant 0 : i32
    %c0_i32_1 = arith.constant 0 : i32
    return %c0_i32, %c0_i32_0 : i32, i32
  }
  func.func @transform_4(%arg0: i32) -> (i32, i32) {
    %c0_i32 = arith.constant 0 : i32
    %c0_i32_0 = arith.constant 0 : i32
    %c0_i32_1 = arith.constant 0 : i32
    return %c0_i32, %c0_i32_0 : i32, i32
  }
  func.func @transform_5(%arg0: i32) -> (i32, i32) {
    %c0_i32 = arith.constant 0 : i32
    %c0_i32_0 = arith.constant 0 : i32
    return %arg0, %c0_i32 : i32, i32
  }
}

module attributes {stable_mosaic.version = 11 : i64} {
  func.func @_pca_ae_kernel(%arg0: i32, %arg1: memref<2x1024xf32, #tpu.memory_space<vmem>>, %arg2: memref<1024x128xbf16, #tpu.memory_space<vmem>>, %arg3: memref<1x128xf32, #tpu.memory_space<vmem>>, %arg4: memref<128x1024xbf16, #tpu.memory_space<vmem>>, %arg5: memref<1x1024xf32, #tpu.memory_space<vmem>>, %arg6: memref<2x1024xf32, #tpu.memory_space<vmem>>) attributes {dimension_semantics = [#tpu.dimension_semantics<parallel>], iteration_bounds = array<i64: 1>, scalar_prefetch = 0 : i64, scratch_operands = 0 : i64, tpu.core_type = #tpu.core_type<tc>, window_params = [{transform_indices = @transform_0, window_bounds = array<i64: 2, 1024>}, {pipeline_mode = #tpu.pipeline_mode<synchronous>, transform_indices = @transform_1, window_bounds = array<i64: 1024, 128>}, {pipeline_mode = #tpu.pipeline_mode<synchronous>, transform_indices = @transform_2, window_bounds = array<i64: 1, 128>}, {pipeline_mode = #tpu.pipeline_mode<synchronous>, transform_indices = @transform_3, window_bounds = array<i64: 128, 1024>}, {pipeline_mode = #tpu.pipeline_mode<synchronous>, transform_indices = @transform_4, window_bounds = array<i64: 1, 1024>}, {transform_indices = @transform_5, window_bounds = array<i64: 2, 1024>}]} {
    %c0 = arith.constant 0 : index
    %c0_0 = arith.constant 0 : index
    %0 = vector.load %arg1[%c0, %c0_0] : memref<2x1024xf32, #tpu.memory_space<vmem>>, vector<2x1024xf32>
    %1 = arith.truncf %0 : vector<2x1024xf32> to vector<2x1024xbf16>
    %c0_1 = arith.constant 0 : index
    %c0_2 = arith.constant 0 : index
    %2 = vector.load %arg2[%c0_1, %c0_2] : memref<1024x128xbf16, #tpu.memory_space<vmem>>, vector<1024x128xbf16>
    %cst = arith.constant dense<0.000000e+00> : vector<2x128xf32>
    %3 = tpu.matmul %1, %2, %cst {dimension_numbers = #tpu.dot_dimension_numbers<[1], [0], [0], [1], [0, 0, 1, 1], [], []>} : vector<2x1024xbf16>, vector<1024x128xbf16>, vector<2x128xf32> -> vector<2x128xf32>
    %c0_3 = arith.constant 0 : index
    %c0_4 = arith.constant 0 : index
    %4 = vector.load %arg3[%c0_3, %c0_4] : memref<1x128xf32, #tpu.memory_space<vmem>>, vector<1x128xf32>
    %5 = vector.broadcast %4 : vector<1x128xf32> to vector<2x128xf32>
    %6 = arith.addf %3, %5 : vector<2x128xf32>
    %7 = arith.truncf %6 : vector<2x128xf32> to vector<2x128xbf16>
    %c0_5 = arith.constant 0 : index
    %c0_6 = arith.constant 0 : index
    %8 = vector.load %arg4[%c0_5, %c0_6] : memref<128x1024xbf16, #tpu.memory_space<vmem>>, vector<128x1024xbf16>
    %cst_7 = arith.constant dense<0.000000e+00> : vector<2x1024xf32>
    %9 = tpu.matmul %7, %8, %cst_7 {dimension_numbers = #tpu.dot_dimension_numbers<[1], [0], [0], [1], [0, 0, 1, 1], [], []>} : vector<2x128xbf16>, vector<128x1024xbf16>, vector<2x1024xf32> -> vector<2x1024xf32>
    %c0_8 = arith.constant 0 : index
    %c0_9 = arith.constant 0 : index
    %10 = vector.load %arg5[%c0_8, %c0_9] : memref<1x1024xf32, #tpu.memory_space<vmem>>, vector<1x1024xf32>
    %11 = vector.broadcast %10 : vector<1x1024xf32> to vector<2x1024xf32>
    %12 = arith.addf %9, %11 : vector<2x1024xf32>
    %c0_10 = arith.constant 0 : index
    %c0_11 = arith.constant 0 : index
    %13 = vector.load %arg6[%c0_10, %c0_11] : memref<2x1024xf32, #tpu.memory_space<vmem>>, vector<2x1024xf32>
    tpu.vector_store %arg6[%c0_10, %c0_11], %12 {strides = array<i32>} : memref<2x1024xf32, #tpu.memory_space<vmem>>, vector<2x1024xf32>,
    return
  }
  func.func @transform_0(%arg0: i32) -> (i32, i32) {
    %c0_i32 = arith.constant 0 : i32
    %c0_i32_0 = arith.constant 0 : i32
    return %arg0, %c0_i32 : i32, i32
  }
  func.func @transform_1(%arg0: i32) -> (i32, i32) {
    %c0_i32 = arith.constant 0 : i32
    %c0_i32_0 = arith.constant 0 : i32
    %c0_i32_1 = arith.constant 0 : i32
    return %c0_i32, %c0_i32_0 : i32, i32
  }
  func.func @transform_2(%arg0: i32) -> (i32, i32) {
    %c0_i32 = arith.constant 0 : i32
    %c0_i32_0 = arith.constant 0 : i32
    %c0_i32_1 = arith.constant 0 : i32
    return %c0_i32, %c0_i32_0 : i32, i32
  }
  func.func @transform_3(%arg0: i32) -> (i32, i32) {
    %c0_i32 = arith.constant 0 : i32
    %c0_i32_0 = arith.constant 0 : i32
    %c0_i32_1 = arith.constant 0 : i32
    return %c0_i32, %c0_i32_0 : i32, i32
  }
  func.func @transform_4(%arg0: i32) -> (i32, i32) {
    %c0_i32 = arith.constant 0 : i32
    %c0_i32_0 = arith.constant 0 : i32
    %c0_i32_1 = arith.constant 0 : i32
    return %c0_i32, %c0_i32_0 : i32, i32
  }
  func.func @transform_5(%arg0: i32) -> (i32, i32) {
    %c0_i32 = arith.constant 0 : i32
    %c0_i32_0 = arith.constant 0 : i32
    return %arg0, %c0_i32 : i32, i32
  }
}

</mosaic_0001>

<llo_original>
// kernel: tpu_custom_call.1
$region0: #{tpu_custom_call.1}
  #allocation0 [shape = 'u32[]', space=smem, size = 0x4, offset = 0x4, fixed_abs, tag = 'smem constant byte address 0x4 - core index']
  #allocation1 [shape = 'u32[144,128]{1,0:T(1,128)}', space=vmem, size = 0x12000, scoped, tag = 'internal scratch']
  %s0 = inlined_call_operand.hbm [shape: f32[2,1024], index: 0, kind: input, shape index: {}]
  %s1 = inlined_call_operand.hbm [shape: bf16[1024,128], index: 1, kind: input, shape index: {}]
  %s2 = inlined_call_operand.vmem [shape: f32[1,128], index: 2, kind: input, shape index: {}]
  %s3 = inlined_call_operand.hbm [shape: bf16[128,1024], index: 3, kind: input, shape index: {}]
  %s4 = inlined_call_operand.vmem [shape: f32[1,1024], index: 4, kind: input, shape index: {}]
  %s5 = inlined_call_operand.hbm [shape: f32[2,1024], index: 5, kind: output, shape index: {}]
  %s6 = sld [smem:[#allocation0]]
  $region42: #{tpu_custom_call.1} parent=0
    _
  %s8 = ssub.s32 1, %s6
  %s9 = scalar_select 0, %s8, %s6
  $region1: #{tpu_custom_call.1} parent=0
    #allocation2 [shape = 'u8[8192]{0}', space=vmem, size = 0x2000, scoped, tag = 'input window, operand 0, single buffered']
    #allocation3 [shape = 's32[1]{0}', space=sflag, size = 0x4, scoped, tag = 'scoped memory for tpu_custom_call.1']
    #allocation4 [shape = 's32[1]{0}', space=sflag, size = 0x4, scoped, tag = 'scoped memory for tpu_custom_call.1']
    #allocation5 [shape = 'u8[262144]{0}', space=vmem, size = 0x40000, scoped, tag = 'input window, operand 1, single buffered']
    #allocation6 [shape = 's32[1]{0}', space=sflag, size = 0x4, scoped, tag = 'scoped memory for tpu_custom_call.1']
    #allocation7 [shape = 'u8[262144]{0}', space=vmem, size = 0x40000, scoped, tag = 'input window, operand 3, single buffered']
    #allocation8 [shape = 'u8[8192]{0}', space=vmem, size = 0x2000, scoped, tag = 'output window, operand 0, single buffered']
    %10 = vsyncpa [#allocation3], 0
    %11 = vsyncpa [#allocation6], 0
    %12 = vsyncpa [#allocation4], 0
    // Predicated region
    $region2: #{tpu_custom_call.1} parent=1 // pred_check
      _
    $region3: #{tpu_custom_call.1} parent=1 // pred_check_branch
      %14 = sbr.rel (0) target = $region5
    $region4: #{tpu_custom_call.1} parent=1 // pred_region
      %s16 = ssub.s32 256, 256
      %17 = vsyncadd [#allocation3], %s16
      %s19 = sshll.u32 [#allocation2], 4
      %s20 = int_to_ptr.vmem [resolvable:$true] %s19
      %22 = dma.hbm_to_vmem [thread:$0]  %s0, 256, %s20, [#allocation3]
    $region5: #{tpu_custom_call.1} parent=1 // pred_fallthru
      _
    // Predicated region
    $region6: #{tpu_custom_call.1} parent=1 // pred_check
      _
    $region7: #{tpu_custom_call.1} parent=1 // pred_check_branch
      %24 = sbr.rel (0) target = $region9
    $region8: #{tpu_custom_call.1} parent=1 // pred_region
      %s26 = ssub.s32 8192, 8192
      %27 = vsyncadd [#allocation6], %s26
      %s28 = sshll.u32 [#allocation5], 4
      %s29 = int_to_ptr.vmem [resolvable:$true] %s28
      %34 = dma.hbm_to_vmem [thread:$0]  %s1, 8192, %s29, [#allocation6], 64, 64, 4
    $region9: #{tpu_custom_call.1} parent=1 // pred_fallthru
      _
    // Predicated region
    $region10: #{tpu_custom_call.1} parent=1 // pred_check
      _
    $region11: #{tpu_custom_call.1} parent=1 // pred_check_branch
      %36 = sbr.rel (0) target = $region13
    $region12: #{tpu_custom_call.1} parent=1 // pred_region
      _
    $region13: #{tpu_custom_call.1} parent=1 // pred_fallthru
      _
    // Predicated region
    $region14: #{tpu_custom_call.1} parent=1 // pred_check
      _
    $region15: #{tpu_custom_call.1} parent=1 // pred_check_branch
      %38 = sbr.rel (0) target = $region17
    $region16: #{tpu_custom_call.1} parent=1 // pred_region
      %s40 = ssub.s32 8192, 8192
      %41 = vsyncadd [#allocation6], %s40
      %s42 = sshll.u32 [#allocation7], 4
      %s43 = int_to_ptr.vmem [resolvable:$true] %s42
      %48 = dma.hbm_to_vmem [thread:$0]  %s3, 8192, %s43, [#allocation6], 512, 512, 32
    $region17: #{tpu_custom_call.1} parent=1 // pred_fallthru
      _
    // Predicated region
    $region18: #{tpu_custom_call.1} parent=1 // pred_check
      _
    $region19: #{tpu_custom_call.1} parent=1 // pred_check_branch
      %50 = sbr.rel (0) target = $region21
    $region20: #{tpu_custom_call.1} parent=1 // pred_region
      _
    $region21: #{tpu_custom_call.1} parent=1 // pred_fallthru
      _
    // Predicated region
    $region22: #{tpu_custom_call.1} parent=1 // pred_check
      _
    $region23: #{tpu_custom_call.1} parent=1 // pred_check_branch
      %52 = sbr.rel (0) target = $region25
    $region24: #{tpu_custom_call.1} parent=1 // pred_region
      %53 = dma.done [#allocation3], 256
    $region25: #{tpu_custom_call.1} parent=1 // pred_fallthru
      _
    // Predicated region
    $region26: #{tpu_custom_call.1} parent=1 // pred_check
      _
    $region27: #{tpu_custom_call.1} parent=1 // pred_check_branch
      %55 = sbr.rel (0) target = $region29
    $region28: #{tpu_custom_call.1} parent=1 // pred_region
      %56 = dma.done [#allocation6], 8192
    $region29: #{tpu_custom_call.1} parent=1 // pred_fallthru
      _
    // Predicated region
    $region30: #{tpu_custom_call.1} parent=1 // pred_check
      _
    $region31: #{tpu_custom_call.1} parent=1 // pred_check_branch
      %58 = sbr.rel (0) target = $region33
    $region32: #{tpu_custom_call.1} parent=1 // pred_region
      %59 = dma.done [#allocation6], 8192
    $region33: #{tpu_custom_call.1} parent=1 // pred_fallthru
      _
    %v61 = vld [vmem:[#allocation2] sm:$0xff]
    %v62 = vld [vmem:[#allocation2 + $0x8] sm:$0xff]
    %v65 = vcombine.high %v61, %v61
    %v67 = vunpack.c.l.s4 1983009808
    %v68 = vunpack.c.0.s8 %v67
    %v69 = vlaneseq
    %v70 = vshrl.u32 %v69, 7
    %v71 = vsub.s32 %v68, %v70
    %v72 = vrot.slane %v61, %v71
    %v74 = vunpack.c.l.s4 1983009808
    %v75 = vunpack.c.0.s8 %v74
    %v76 = vlaneseq
    %v77 = vshrl.u32 %v76, 7
    %v78 = vsub.s32 %v75, %v77
    %v79 = vrot.slane %v65, %v78
    %v80 = vcombine.high %v72, %v72
    %v81 = vcombine.high %v79, %v79
    %v82 = vcombine.high %v62, %v62
    %v84 = vunpack.c.l.s4 1983009808
    %v85 = vunpack.c.0.s8 %v84
    %v86 = vlaneseq
    %v87 = vshrl.u32 %v86, 7
    %v88 = vsub.s32 %v85, %v87
    %v89 = vrot.slane %v62, %v88
    %v91 = vunpack.c.l.s4 1983009808
    %v92 = vunpack.c.0.s8 %v91
    %v93 = vlaneseq
    %v94 = vshrl.u32 %v93, 7
    %v95 = vsub.s32 %v92, %v94
    %v96 = vrot.slane %v82, %v95
    %v97 = vcombine.high %v89, %v89
    %v98 = vcombine.high %v96, %v96
    %v107 = vpack.c.bf16 %v72, %v72
    %v108 = vpack.c.bf16 %v80, %v80
    %v109 = vpack.c.bf16 %v79, %v79
    %v110 = vpack.c.bf16 %v81, %v81
    %v111 = vpack.c.bf16 %v89, %v89
    %v112 = vpack.c.bf16 %v97, %v97
    %v113 = vpack.c.bf16 %v96, %v96
    %v114 = vpack.c.bf16 %v98, %v98
    %v115 = vld [vmem:[#allocation5] sm:$0xf]
    %v116 = vld [vmem:[#allocation5 + $0x4] sm:$0xf]
    %v117 = vld [vmem:[#allocation5 + $0x8] sm:$0xf]
    %v118 = vld [vmem:[#allocation5 + $0xc] sm:$0xf]
    %v119 = vld [vmem:[#allocation5 + $0x10] sm:$0xf]
    %v120 = vld [vmem:[#allocation5 + $0x14] sm:$0xf]
    %v121 = vld [vmem:[#allocation5 + $0x18] sm:$0xf]
    %v122 = vld [vmem:[#allocation5 + $0x1c] sm:$0xf]
    %v123 = vld [vmem:[#allocation5 + $0x20] sm:$0xf]
    %v124 = vld [vmem:[#allocation5 + $0x24] sm:$0xf]
    %v125 = vld [vmem:[#allocation5 + $0x28] sm:$0xf]
    %v126 = vld [vmem:[#allocation5 + $0x2c] sm:$0xf]
    %v127 = vld [vmem:[#allocation5 + $0x30] sm:$0xf]
    %v128 = vld [vmem:[#allocation5 + $0x34] sm:$0xf]
    %v129 = vld [vmem:[#allocation5 + $0x38] sm:$0xf]
    %v130 = vld [vmem:[#allocation5 + $0x3c] sm:$0xf]
    %v131 = vld [vmem:[#allocation5 + $0x40] sm:$0xf]
    %v132 = vld [vmem:[#allocation5 + $0x44] sm:$0xf]
    %v133 = vld [vmem:[#allocation5 + $0x48] sm:$0xf]
    %v134 = vld [vmem:[#allocation5 + $0x4c] sm:$0xf]
    %v135 = vld [vmem:[#allocation5 + $0x50] sm:$0xf]
    %v136 = vld [vmem:[#allocation5 + $0x54] sm:$0xf]
    %v137 = vld [vmem:[#allocation5 + $0x58] sm:$0xf]
    %v138 = vld [vmem:[#allocation5 + $0x5c] sm:$0xf]
    %v139 = vld [vmem:[#allocation5 + $0x60] sm:$0xf]
    %v140 = vld [vmem:[#allocation5 + $0x64] sm:$0xf]
    %v141 = vld [vmem:[#allocation5 + $0x68] sm:$0xf]
    %v142 = vld [vmem:[#allocation5 + $0x6c] sm:$0xf]
    %v143 = vld [vmem:[#allocation5 + $0x70] sm:$0xf]
    %v144 = vld [vmem:[#allocation5 + $0x74] sm:$0xf]
    %v145 = vld [vmem:[#allocation5 + $0x78] sm:$0xf]
    %v146 = vld [vmem:[#allocation5 + $0x7c] sm:$0xf]
    %v147 = vld [vmem:[#allocation5 + $0x80] sm:$0xf]
    %v148 = vld [vmem:[#allocation5 + $0x84] sm:$0xf]
    %v149 = vld [vmem:[#allocation5 + $0x88] sm:$0xf]
    %v150 = vld [vmem:[#allocation5 + $0x8c] sm:$0xf]
    %v151 = vld [vmem:[#allocation5 + $0x90] sm:$0xf]
    %v152 = vld [vmem:[#allocation5 + $0x94] sm:$0xf]
    %v153 = vld [vmem:[#allocation5 + $0x98] sm:$0xf]
    %v154 = vld [vmem:[#allocation5 + $0x9c] sm:$0xf]
    %v155 = vld [vmem:[#allocation5 + $0xa0] sm:$0xf]
    %v156 = vld [vmem:[#allocation5 + $0xa4] sm:$0xf]
    %v157 = vld [vmem:[#allocation5 + $0xa8] sm:$0xf]
    %v158 = vld [vmem:[#allocation5 + $0xac] sm:$0xf]
    %v159 = vld [vmem:[#allocation5 + $0xb0] sm:$0xf]
    %v160 = vld [vmem:[#allocation5 + $0xb4] sm:$0xf]
    %v161 = vld [vmem:[#allocation5 + $0xb8] sm:$0xf]
    %v162 = vld [vmem:[#allocation5 + $0xbc] sm:$0xf]
    %v163 = vld [vmem:[#allocation5 + $0xc0] sm:$0xf]
    %v164 = vld [vmem:[#allocation5 + $0xc4] sm:$0xf]
    %v165 = vld [vmem:[#allocation5 + $0xc8] sm:$0xf]
    %v166 = vld [vmem:[#allocation5 + $0xcc] sm:$0xf]
    %v167 = vld [vmem:[#allocation5 + $0xd0] sm:$0xf]
    %v168 = vld [vmem:[#allocation5 + $0xd4] sm:$0xf]
    %v169 = vld [vmem:[#allocation5 + $0xd8] sm:$0xf]
    %v170 = vld [vmem:[#allocation5 + $0xdc] sm:$0xf]
    %v171 = vld [vmem:[#allocation5 + $0xe0] sm:$0xf]
    %v172 = vld [vmem:[#allocation5 + $0xe4] sm:$0xf]
    %v173 = vld [vmem:[#allocation5 + $0xe8] sm:$0xf]
    %v174 = vld [vmem:[#allocation5 + $0xec] sm:$0xf]
    %v175 = vld [vmem:[#allocation5 + $0xf0] sm:$0xf]
    %v176 = vld [vmem:[#allocation5 + $0xf4] sm:$0xf]
    %v177 = vld [vmem:[#allocation5 + $0xf8] sm:$0xf]
    %v178 = vld [vmem:[#allocation5 + $0xfc] sm:$0xf]
    %v179 = vld [vmem:[#allocation5 + $0x100] sm:$0xf]
    %v180 = vld [vmem:[#allocation5 + $0x104] sm:$0xf]
    %v181 = vld [vmem:[#allocation5 + $0x108] sm:$0xf]
    %v182 = vld [vmem:[#allocation5 + $0x10c] sm:$0xf]
    %v183 = vld [vmem:[#allocation5 + $0x110] sm:$0xf]
    %v184 = vld [vmem:[#allocation5 + $0x114] sm:$0xf]
    %v185 = vld [vmem:[#allocation5 + $0x118] sm:$0xf]
    %v186 = vld [vmem:[#allocation5 + $0x11c] sm:$0xf]
    %v187 = vld [vmem:[#allocation5 + $0x120] sm:$0xf]
    %v188 = vld [vmem:[#allocation5 + $0x124] sm:$0xf]
    %v189 = vld [vmem:[#allocation5 + $0x128] sm:$0xf]
    %v190 = vld [vmem:[#allocation5 + $0x12c] sm:$0xf]
    %v191 = vld [vmem:[#allocation5 + $0x130] sm:$0xf]
    %v192 = vld [vmem:[#allocation5 + $0x134] sm:$0xf]
    %v193 = vld [vmem:[#allocation5 + $0x138] sm:$0xf]
    %v194 = vld [vmem:[#allocation5 + $0x13c] sm:$0xf]
    %v195 = vld [vmem:[#allocation5 + $0x140] sm:$0xf]
    %v196 = vld [vmem:[#allocation5 + $0x144] sm:$0xf]
    %v197 = vld [vmem:[#allocation5 + $0x148] sm:$0xf]
    %v198 = vld [vmem:[#allocation5 + $0x14c] sm:$0xf]
    %v199 = vld [vmem:[#allocation5 + $0x150] sm:$0xf]
    %v200 = vld [vmem:[#allocation5 + $0x154] sm:$0xf]
    %v201 = vld [vmem:[#allocation5 + $0x158] sm:$0xf]
    %v202 = vld [vmem:[#allocation5 + $0x15c] sm:$0xf]
    %v203 = vld [vmem:[#allocation5 + $0x160] sm:$0xf]
    %v204 = vld [vmem:[#allocation5 + $0x164] sm:$0xf]
    %v205 = vld [vmem:[#allocation5 + $0x168] sm:$0xf]
    %v206 = vld [vmem:[#allocation5 + $0x16c] sm:$0xf]
    %v207 = vld [vmem:[#allocation5 + $0x170] sm:$0xf]
    %v208 = vld [vmem:[#allocation5 + $0x174] sm:$0xf]
    %v209 = vld [vmem:[#allocation5 + $0x178] sm:$0xf]
    %v210 = vld [vmem:[#allocation5 + $0x17c] sm:$0xf]
    %v211 = vld [vmem:[#allocation5 + $0x180] sm:$0xf]
    %v212 = vld [vmem:[#allocation5 + $0x184] sm:$0xf]
    %v213 = vld [vmem:[#allocation5 + $0x188] sm:$0xf]
    %v214 = vld [vmem:[#allocation5 + $0x18c] sm:$0xf]
    %v215 = vld [vmem:[#allocation5 + $0x190] sm:$0xf]
    %v216 = vld [vmem:[#allocation5 + $0x194] sm:$0xf]
    %v217 = vld [vmem:[#allocation5 + $0x198] sm:$0xf]
    %v218 = vld [vmem:[#allocation5 + $0x19c] sm:$0xf]
    %v219 = vld [vmem:[#allocation5 + $0x1a0] sm:$0xf]
    %v220 = vld [vmem:[#allocation5 + $0x1a4] sm:$0xf]
    %v221 = vld [vmem:[#allocation5 + $0x1a8] sm:$0xf]
    %v222 = vld [vmem:[#allocation5 + $0x1ac] sm:$0xf]
    %v223 = vld [vmem:[#allocation5 + $0x1b0] sm:$0xf]
    %v224 = vld [vmem:[#allocation5 + $0x1b4] sm:$0xf]
    %v225 = vld [vmem:[#allocation5 + $0x1b8] sm:$0xf]
    %v226 = vld [vmem:[#allocation5 + $0x1bc] sm:$0xf]
    %v227 = vld [vmem:[#allocation5 + $0x1c0] sm:$0xf]
    %v228 = vld [vmem:[#allocation5 + $0x1c4] sm:$0xf]
    %v229 = vld [vmem:[#allocation5 + $0x1c8] sm:$0xf]
    %v230 = vld [vmem:[#allocation5 + $0x1cc] sm:$0xf]
    %v231 = vld [vmem:[#allocation5 + $0x1d0] sm:$0xf]
    %v232 = vld [vmem:[#allocation5 + $0x1d4] sm:$0xf]
    %v233 = vld [vmem:[#allocation5 + $0x1d8] sm:$0xf]
    %v234 = vld [vmem:[#allocation5 + $0x1dc] sm:$0xf]
    %v235 = vld [vmem:[#allocation5 + $0x1e0] sm:$0xf]
    %v236 = vld [vmem:[#allocation5 + $0x1e4] sm:$0xf]
    %v237 = vld [vmem:[#allocation5 + $0x1e8] sm:$0xf]
    %v238 = vld [vmem:[#allocation5 + $0x1ec] sm:$0xf]
    %v239 = vld [vmem:[#allocation5 + $0x1f0] sm:$0xf]
    %v240 = vld [vmem:[#allocation5 + $0x1f4] sm:$0xf]
    %v241 = vld [vmem:[#allocation5 + $0x1f8] sm:$0xf]
    %v242 = vld [vmem:[#allocation5 + $0x1fc] sm:$0xf]
    %v243 = vld [vmem:[%s2] sm:$0x1]
    %v245 = vlaneseq
    %v246 = vshrl.u32 %v245, 7
    %v247 = vsub.s32 0, %v246
    %v248 = vrot.slane %v243, %v247
    %v378 = vunpack.c.l.b16 %v115
    %v379 = vunpack.c.l.b16 %v116
    %v380 = vunpack.c.l.b16 %v117
    %v381 = vunpack.c.l.b16 %v118
    %v382 = vunpack.c.l.b16 %v119
    %v383 = vunpack.c.l.b16 %v120
    %v384 = vunpack.c.l.b16 %v121
    %v385 = vunpack.c.l.b16 %v122
    %v386 = vunpack.c.l.b16 %v123
    %v387 = vunpack.c.l.b16 %v124
    %v388 = vunpack.c.l.b16 %v125
    %v389 = vunpack.c.l.b16 %v126
    %v390 = vunpack.c.l.b16 %v127
    %v391 = vunpack.c.l.b16 %v128
    %v392 = vunpack.c.l.b16 %v129
    %v393 = vunpack.c.l.b16 %v130
    %v394 = vunpack.c.l.b16 %v131
    %v395 = vunpack.c.l.b16 %v132
    %v396 = vunpack.c.l.b16 %v133
    %v397 = vunpack.c.l.b16 %v134
    %v398 = vunpack.c.l.b16 %v135
    %v399 = vunpack.c.l.b16 %v136
    %v400 = vunpack.c.l.b16 %v137
    %v401 = vunpack.c.l.b16 %v138
    %v402 = vunpack.c.l.b16 %v139
    %v403 = vunpack.c.l.b16 %v140
    %v404 = vunpack.c.l.b16 %v141
    %v405 = vunpack.c.l.b16 %v142
    %v406 = vunpack.c.l.b16 %v143
    %v407 = vunpack.c.l.b16 %v144
    %v408 = vunpack.c.l.b16 %v145
    %v409 = vunpack.c.l.b16 %v146
    %v410 = vunpack.c.l.b16 %v147
    %v411 = vunpack.c.l.b16 %v148
    %v412 = vunpack.c.l.b16 %v149
    %v413 = vunpack.c.l.b16 %v150
    %v414 = vunpack.c.l.b16 %v151
    %v415 = vunpack.c.l.b16 %v152
    %v416 = vunpack.c.l.b16 %v153
    %v417 = vunpack.c.l.b16 %v154
    %v418 = vunpack.c.l.b16 %v155
    %v419 = vunpack.c.l.b16 %v156
    %v420 = vunpack.c.l.b16 %v157
    %v421 = vunpack.c.l.b16 %v158
    %v422 = vunpack.c.l.b16 %v159
    %v423 = vunpack.c.l.b16 %v160
    %v424 = vunpack.c.l.b16 %v161
    %v425 = vunpack.c.l.b16 %v162
    %v426 = vunpack.c.l.b16 %v163
    %v427 = vunpack.c.l.b16 %v164
    %v428 = vunpack.c.l.b16 %v165
    %v429 = vunpack.c.l.b16 %v166
    %v430 = vunpack.c.l.b16 %v167
    %v431 = vunpack.c.l.b16 %v168
    %v432 = vunpack.c.l.b16 %v169
    %v433 = vunpack.c.l.b16 %v170
    %v434 = vunpack.c.l.b16 %v171
    %v435 = vunpack.c.l.b16 %v172
    %v436 = vunpack.c.l.b16 %v173
    %v437 = vunpack.c.l.b16 %v174
    %v438 = vunpack.c.l.b16 %v175
    %v439 = vunpack.c.l.b16 %v176
    %v440 = vunpack.c.l.b16 %v177
    %v441 = vunpack.c.l.b16 %v178
    %v442 = vunpack.c.l.b16 %v179
    %v443 = vunpack.c.l.b16 %v180
    %v444 = vunpack.c.l.b16 %v181
    %v445 = vunpack.c.l.b16 %v182
    %v446 = vunpack.c.l.b16 %v183
    %v447 = vunpack.c.l.b16 %v184
    %v448 = vunpack.c.l.b16 %v185
    %v449 = vunpack.c.l.b16 %v186
    %v450 = vunpack.c.l.b16 %v187
    %v451 = vunpack.c.l.b16 %v188
    %v452 = vunpack.c.l.b16 %v189
    %v453 = vunpack.c.l.b16 %v190
    %v454 = vunpack.c.l.b16 %v191
    %v455 = vunpack.c.l.b16 %v192
    %v456 = vunpack.c.l.b16 %v193
    %v457 = vunpack.c.l.b16 %v194
    %v458 = vunpack.c.l.b16 %v195
    %v459 = vunpack.c.l.b16 %v196
    %v460 = vunpack.c.l.b16 %v197
    %v461 = vunpack.c.l.b16 %v198
    %v462 = vunpack.c.l.b16 %v199
    %v463 = vunpack.c.l.b16 %v200
    %v464 = vunpack.c.l.b16 %v201
    %v465 = vunpack.c.l.b16 %v202
    %v466 = vunpack.c.l.b16 %v203
    %v467 = vunpack.c.l.b16 %v204
    %v468 = vunpack.c.l.b16 %v205
    %v469 = vunpack.c.l.b16 %v206
    %v470 = vunpack.c.l.b16 %v207
    %v471 = vunpack.c.l.b16 %v208
    %v472 = vunpack.c.l.b16 %v209
    %v473 = vunpack.c.l.b16 %v210
    %v474 = vunpack.c.l.b16 %v211
    %v475 = vunpack.c.l.b16 %v212
    %v476 = vunpack.c.l.b16 %v213
    %v477 = vunpack.c.l.b16 %v214
    %v478 = vunpack.c.l.b16 %v215
    %v479 = vunpack.c.l.b16 %v216
    %v480 = vunpack.c.l.b16 %v217
    %v481 = vunpack.c.l.b16 %v218
    %v482 = vunpack.c.l.b16 %v219
    %v483 = vunpack.c.l.b16 %v220
    %v484 = vunpack.c.l.b16 %v221
    %v485 = vunpack.c.l.b16 %v222
    %v486 = vunpack.c.l.b16 %v223
    %v487 = vunpack.c.l.b16 %v224
    %v488 = vunpack.c.l.b16 %v225
    %v489 = vunpack.c.l.b16 %v226
    %v490 = vunpack.c.l.b16 %v227
    %v491 = vunpack.c.l.b16 %v228
    %v492 = vunpack.c.l.b16 %v229
    %v493 = vunpack.c.l.b16 %v230
    %v494 = vunpack.c.l.b16 %v231
    %v495 = vunpack.c.l.b16 %v232
    %v496 = vunpack.c.l.b16 %v233
    %v497 = vunpack.c.l.b16 %v234
    %v498 = vunpack.c.l.b16 %v235
    %v499 = vunpack.c.l.b16 %v236
    %v500 = vunpack.c.l.b16 %v237
    %v501 = vunpack.c.l.b16 %v238
    %v502 = vunpack.c.l.b16 %v239
    %v503 = vunpack.c.l.b16 %v240
    %v504 = vunpack.c.l.b16 %v241
    %v505 = vunpack.c.l.b16 %v242
    %v506 = vpack.c.b16 %v379, %v378
    %v507 = vpack.c.b16 %v381, %v380
    %v508 = vpack.c.b16 %v383, %v382
    %v509 = vpack.c.b16 %v385, %v384
    %v510 = vpack.c.b16 %v387, %v386
    %v511 = vpack.c.b16 %v389, %v388
    %v512 = vpack.c.b16 %v391, %v390
    %v513 = vpack.c.b16 %v393, %v392
    %v514 = vpack.c.b16 %v395, %v394
    %v515 = vpack.c.b16 %v397, %v396
    %v516 = vpack.c.b16 %v399, %v398
    %v517 = vpack.c.b16 %v401, %v400
    %v518 = vpack.c.b16 %v403, %v402
    %v519 = vpack.c.b16 %v405, %v404
    %v520 = vpack.c.b16 %v407, %v406
    %v521 = vpack.c.b16 %v409, %v408
    %v522 = vpack.c.b16 %v411, %v410
    %v523 = vpack.c.b16 %v413, %v412
    %v524 = vpack.c.b16 %v415, %v414
    %v525 = vpack.c.b16 %v417, %v416
    %v526 = vpack.c.b16 %v419, %v418
    %v527 = vpack.c.b16 %v421, %v420
    %v528 = vpack.c.b16 %v423, %v422
    %v529 = vpack.c.b16 %v425, %v424
    %v530 = vpack.c.b16 %v427, %v426
    %v531 = vpack.c.b16 %v429, %v428
    %v532 = vpack.c.b16 %v431, %v430
    %v533 = vpack.c.b16 %v433, %v432
    %v534 = vpack.c.b16 %v435, %v434
    %v535 = vpack.c.b16 %v437, %v436
    %v536 = vpack.c.b16 %v439, %v438
    %v537 = vpack.c.b16 %v441, %v440
    %v538 = vpack.c.b16 %v443, %v442
    %v539 = vpack.c.b16 %v445, %v444
    %v540 = vpack.c.b16 %v447, %v446
    %v541 = vpack.c.b16 %v449, %v448
    %v542 = vpack.c.b16 %v451, %v450
    %v543 = vpack.c.b16 %v453, %v452
    %v544 = vpack.c.b16 %v455, %v454
    %v545 = vpack.c.b16 %v457, %v456
    %v546 = vpack.c.b16 %v459, %v458
    %v547 = vpack.c.b16 %v461, %v460
    %v548 = vpack.c.b16 %v463, %v462
    %v549 = vpack.c.b16 %v465, %v464
    %v550 = vpack.c.b16 %v467, %v466
    %v551 = vpack.c.b16 %v469, %v468
    %v552 = vpack.c.b16 %v471, %v470
    %v553 = vpack.c.b16 %v473, %v472
    %v554 = vpack.c.b16 %v475, %v474
    %v555 = vpack.c.b16 %v477, %v476
    %v556 = vpack.c.b16 %v479, %v478
    %v557 = vpack.c.b16 %v481, %v480
    %v558 = vpack.c.b16 %v483, %v482
    %v559 = vpack.c.b16 %v485, %v484
    %v560 = vpack.c.b16 %v487, %v486
    %v561 = vpack.c.b16 %v489, %v488
    %v562 = vpack.c.b16 %v491, %v490
    %v563 = vpack.c.b16 %v493, %v492
    %v564 = vpack.c.b16 %v495, %v494
    %v565 = vpack.c.b16 %v497, %v496
    %v566 = vpack.c.b16 %v499, %v498
    %v567 = vpack.c.b16 %v501, %v500
    %v568 = vpack.c.b16 %v503, %v502
    %v569 = vpack.c.b16 %v505, %v504
    %634 = vmatprep.subr.bf16.mxu0 0
    %635 = vmatpush1.bf16.msra.mxu0 %v506
    %636 = vmatprep.subr.bf16.mxu0 0
    %637 = vmatpush1.bf16.msra.mxu0 %v507
    %638 = vmatprep.subr.bf16.mxu0 0
    %639 = vmatpush1.bf16.msra.mxu0 %v508
    %640 = vmatprep.subr.bf16.mxu0 0
    %641 = vmatpush1.bf16.msra.mxu0 %v509
    %642 = vmatprep.subr.bf16.mxu0 0
    %643 = vmatpush1.bf16.msra.mxu0 %v510
    %644 = vmatprep.subr.bf16.mxu0 0
    %645 = vmatpush1.bf16.msra.mxu0 %v511
    %646 = vmatprep.subr.bf16.mxu0 0
    %647 = vmatpush1.bf16.msra.mxu0 %v512
    %648 = vmatprep.subr.bf16.mxu0 0
    %649 = vmatpush1.bf16.msra.mxu0 %v513
    %650 = vmatprep.subr.bf16.mxu0 0
    %651 = vmatpush1.bf16.msra.mxu0 %v514
    %652 = vmatprep.subr.bf16.mxu0 0
    %653 = vmatpush1.bf16.msra.mxu0 %v515
    %654 = vmatprep.subr.bf16.mxu0 0
    %655 = vmatpush1.bf16.msra.mxu0 %v516
    %656 = vmatprep.subr.bf16.mxu0 0
    %657 = vmatpush1.bf16.msra.mxu0 %v517
    %658 = vmatprep.subr.bf16.mxu0 0
    %659 = vmatpush1.bf16.msra.mxu0 %v518
    %660 = vmatprep.subr.bf16.mxu0 0
    %661 = vmatpush1.bf16.msra.mxu0 %v519
    %662 = vmatprep.subr.bf16.mxu0 0
    %663 = vmatpush1.bf16.msra.mxu0 %v520
    %664 = vmatprep.subr.bf16.mxu0 0
    %665 = vmatpush1.bf16.msra.mxu0 %v521
    %666 = vmatprep.mubr.bf16.mxu0 %v108
    %667 = vmatmul.mubr.bf16.gmra.mrb[0].mxu0 %v107
    %v668 = vpop.f32.mrb[0].mxu0
    %v669 = vadd.f32 %v248, %v668
    %v670 = vpop.f32.mrb[0].mxu0
    %v671 = vpop.f32.mrb[0].mxu0
    %v672 = vpop.f32.mrb[0].mxu0
    %673 = vdwg.mxu0
    %674 = vmatprep.subr.bf16.mxu0 0
    %675 = vmatpush1.bf16.msra.mxu0 %v522
    %676 = vmatprep.subr.bf16.mxu0 0
    %677 = vmatpush1.bf16.msra.mxu0 %v523
    %678 = vmatprep.subr.bf16.mxu0 0
    %679 = vmatpush1.bf16.msra.mxu0 %v524
    %680 = vmatprep.subr.bf16.mxu0 0
    %681 = vmatpush1.bf16.msra.mxu0 %v525
    %682 = vmatprep.subr.bf16.mxu0 0
    %683 = vmatpush1.bf16.msra.mxu0 %v526
    %684 = vmatprep.subr.bf16.mxu0 0
    %685 = vmatpush1.bf16.msra.mxu0 %v527
    %686 = vmatprep.subr.bf16.mxu0 0
    %687 = vmatpush1.bf16.msra.mxu0 %v528
    %688 = vmatprep.subr.bf16.mxu0 0
    %689 = vmatpush1.bf16.msra.mxu0 %v529
    %690 = vmatprep.subr.bf16.mxu0 0
    %691 = vmatpush1.bf16.msra.mxu0 %v530
    %692 = vmatprep.subr.bf16.mxu0 0
    %693 = vmatpush1.bf16.msra.mxu0 %v531
    %694 = vmatprep.subr.bf16.mxu0 0
    %695 = vmatpush1.bf16.msra.mxu0 %v532
    %696 = vmatprep.subr.bf16.mxu0 0
    %697 = vmatpush1.bf16.msra.mxu0 %v533
    %698 = vmatprep.subr.bf16.mxu0 0
    %699 = vmatpush1.bf16.msra.mxu0 %v534
    %700 = vmatprep.subr.bf16.mxu0 0
    %701 = vmatpush1.bf16.msra.mxu0 %v535
    %702 = vmatprep.subr.bf16.mxu0 0
    %703 = vmatpush1.bf16.msra.mxu0 %v536
    %704 = vmatprep.subr.bf16.mxu0 0
    %705 = vmatpush1.bf16.msra.mxu0 %v537
    %706 = vmatprep.mubr.bf16.mxu0 %v110
    %707 = vmatmul.mubr.bf16.gmra.mrb[0].mxu0 %v109
    %v708 = vpop.f32.mrb[0].mxu0
    %v709 = vadd.f32 %v669, %v708
    %v710 = vpop.f32.mrb[0].mxu0
    %v711 = vpop.f32.mrb[0].mxu0
    %v712 = vpop.f32.mrb[0].mxu0
    %713 = vdwg.mxu0
    %714 = vmatprep.subr.bf16.mxu0 0
    %715 = vmatpush1.bf16.msra.mxu0 %v538
    %716 = vmatprep.subr.bf16.mxu0 0
    %717 = vmatpush1.bf16.msra.mxu0 %v539
    %718 = vmatprep.subr.bf16.mxu0 0
    %719 = vmatpush1.bf16.msra.mxu0 %v540
    %720 = vmatprep.subr.bf16.mxu0 0
    %721 = vmatpush1.bf16.msra.mxu0 %v541
    %722 = vmatprep.subr.bf16.mxu0 0
    %723 = vmatpush1.bf16.msra.mxu0 %v542
    %724 = vmatprep.subr.bf16.mxu0 0
    %725 = vmatpush1.bf16.msra.mxu0 %v543
    %726 = vmatprep.subr.bf16.mxu0 0
    %727 = vmatpush1.bf16.msra.mxu0 %v544
    %728 = vmatprep.subr.bf16.mxu0 0
    %729 = vmatpush1.bf16.msra.mxu0 %v545
    %730 = vmatprep.subr.bf16.mxu0 0
    %731 = vmatpush1.bf16.msra.mxu0 %v546
    %732 = vmatprep.subr.bf16.mxu0 0
    %733 = vmatpush1.bf16.msra.mxu0 %v547
    %734 = vmatprep.subr.bf16.mxu0 0
    %735 = vmatpush1.bf16.msra.mxu0 %v548
    %736 = vmatprep.subr.bf16.mxu0 0
    %737 = vmatpush1.bf16.msra.mxu0 %v549
    %738 = vmatprep.subr.bf16.mxu0 0
    %739 = vmatpush1.bf16.msra.mxu0 %v550
    %740 = vmatprep.subr.bf16.mxu0 0
    %741 = vmatpush1.bf16.msra.mxu0 %v551
    %742 = vmatprep.subr.bf16.mxu0 0
    %743 = vmatpush1.bf16.msra.mxu0 %v552
    %744 = vmatprep.subr.bf16.mxu0 0
    %745 = vmatpush1.bf16.msra.mxu0 %v553
    %746 = vmatprep.mubr.bf16.mxu0 %v112
    %747 = vmatmul.mubr.bf16.gmra.mrb[0].mxu0 %v111
    %v748 = vpop.f32.mrb[0].mxu0
    %v749 = vadd.f32 %v709, %v748
    %v750 = vpop.f32.mrb[0].mxu0
    %v751 = vpop.f32.mrb[0].mxu0
    %v752 = vpop.f32.mrb[0].mxu0
    %753 = vdwg.mxu0
    %754 = vmatprep.subr.bf16.mxu0 0
    %755 = vmatpush1.bf16.msra.mxu0 %v554
    %756 = vmatprep.subr.bf16.mxu0 0
    %757 = vmatpush1.bf16.msra.mxu0 %v555
    %758 = vmatprep.subr.bf16.mxu0 0
    %759 = vmatpush1.bf16.msra.mxu0 %v556
    %760 = vmatprep.subr.bf16.mxu0 0
    %761 = vmatpush1.bf16.msra.mxu0 %v557
    %762 = vmatprep.subr.bf16.mxu0 0
    %763 = vmatpush1.bf16.msra.mxu0 %v558
    %764 = vmatprep.subr.bf16.mxu0 0
    %765 = vmatpush1.bf16.msra.mxu0 %v559
    %766 = vmatprep.subr.bf16.mxu0 0
    %767 = vmatpush1.bf16.msra.mxu0 %v560
    %768 = vmatprep.subr.bf16.mxu0 0
    %769 = vmatpush1.bf16.msra.mxu0 %v561
    %770 = vmatprep.subr.bf16.mxu0 0
    %771 = vmatpush1.bf16.msra.mxu0 %v562
    %772 = vmatprep.subr.bf16.mxu0 0
    %773 = vmatpush1.bf16.msra.mxu0 %v563
    %774 = vmatprep.subr.bf16.mxu0 0
    %775 = vmatpush1.bf16.msra.mxu0 %v564
    %776 = vmatprep.subr.bf16.mxu0 0
    %777 = vmatpush1.bf16.msra.mxu0 %v565
    %778 = vmatprep.subr.bf16.mxu0 0
    %779 = vmatpush1.bf16.msra.mxu0 %v566
    %780 = vmatprep.subr.bf16.mxu0 0
    %781 = vmatpush1.bf16.msra.mxu0 %v567
    %782 = vmatprep.subr.bf16.mxu0 0
    %783 = vmatpush1.bf16.msra.mxu0 %v568
    %784 = vmatprep.subr.bf16.mxu0 0
    %785 = vmatpush1.bf16.msra.mxu0 %v569
    %786 = vmatprep.mubr.bf16.mxu0 %v114
    %787 = vmatmul.mubr.bf16.gmra.mrb[0].mxu0 %v113
    %v788 = vpop.f32.mrb[0].mxu0
    %v789 = vadd.f32 %v749, %v788
    %v790 = vpop.f32.mrb[0].mxu0
    %v791 = vpop.f32.mrb[0].mxu0
    %v792 = vpop.f32.mrb[0].mxu0
    %793 = vdwg.mxu0
    %v794 = vpack.c.bf16 %v789, %v789
    %v795 = vld [vmem:[#allocation7] sm:$0xff]
    %v796 = vld [vmem:[#allocation7 + $0x8] sm:$0xff]
    %v797 = vld [vmem:[#allocation7 + $0x10] sm:$0xff]
    %v798 = vld [vmem:[#allocation7 + $0x18] sm:$0xff]
    %v799 = vld [vmem:[#allocation7 + $0x20] sm:$0xff]
    %v800 = vld [vmem:[#allocation7 + $0x28] sm:$0xff]
    %v801 = vld [vmem:[#allocation7 + $0x30] sm:$0xff]
    %v802 = vld [vmem:[#allocation7 + $0x38] sm:$0xff]
    %v803 = vld [vmem:[#allocation7 + $0x40] sm:$0xff]
    %v804 = vld [vmem:[#allocation7 + $0x48] sm:$0xff]
    %v805 = vld [vmem:[#allocation7 + $0x50] sm:$0xff]
    %v806 = vld [vmem:[#allocation7 + $0x58] sm:$0xff]
    %v807 = vld [vmem:[#allocation7 + $0x60] sm:$0xff]
    %v808 = vld [vmem:[#allocation7 + $0x68] sm:$0xff]
    %v809 = vld [vmem:[#allocation7 + $0x70] sm:$0xff]
    %v810 = vld [vmem:[#allocation7 + $0x78] sm:$0xff]
    %v811 = vld [vmem:[#allocation7 + $0x80] sm:$0xff]
    %v812 = vld [vmem:[#allocation7 + $0x88] sm:$0xff]
    %v813 = vld [vmem:[#allocation7 + $0x90] sm:$0xff]
    %v814 = vld [vmem:[#allocation7 + $0x98] sm:$0xff]
    %v815 = vld [vmem:[#allocation7 + $0xa0] sm:$0xff]
    %v816 = vld [vmem:[#allocation7 + $0xa8] sm:$0xff]
    %v817 = vld [vmem:[#allocation7 + $0xb0] sm:$0xff]
    %v818 = vld [vmem:[#allocation7 + $0xb8] sm:$0xff]
    %v819 = vld [vmem:[#allocation7 + $0xc0] sm:$0xff]
    %v820 = vld [vmem:[#allocation7 + $0xc8] sm:$0xff]
    %v821 = vld [vmem:[#allocation7 + $0xd0] sm:$0xff]
    %v822 = vld [vmem:[#allocation7 + $0xd8] sm:$0xff]
    %v823 = vld [vmem:[#allocation7 + $0xe0] sm:$0xff]
    %v824 = vld [vmem:[#allocation7 + $0xe8] sm:$0xff]
    %v825 = vld [vmem:[#allocation7 + $0xf0] sm:$0xff]
    %v826 = vld [vmem:[#allocation7 + $0xf8] sm:$0xff]
    %v827 = vld [vmem:[#allocation7 + $0x100] sm:$0xff]
    %v828 = vld [vmem:[#allocation7 + $0x108] sm:$0xff]
    %v829 = vld [vmem:[#allocation7 + $0x110] sm:$0xff]
    %v830 = vld [vmem:[#allocation7 + $0x118] sm:$0xff]
    %v831 = vld [vmem:[#allocation7 + $0x120] sm:$0xff]
    %v832 = vld [vmem:[#allocation7 + $0x128] sm:$0xff]
    %v833 = vld [vmem:[#allocation7 + $0x130] sm:$0xff]
    %v834 = vld [vmem:[#allocation7 + $0x138] sm:$0xff]
    %v835 = vld [vmem:[#allocation7 + $0x140] sm:$0xff]
    %v836 = vld [vmem:[#allocation7 + $0x148] sm:$0xff]
    %v837 = vld [vmem:[#allocation7 + $0x150] sm:$0xff]
    %v838 = vld [vmem:[#allocation7 + $0x158] sm:$0xff]
    %v839 = vld [vmem:[#allocation7 + $0x160] sm:$0xff]
    %v840 = vld [vmem:[#allocation7 + $0x168] sm:$0xff]
    %v841 = vld [vmem:[#allocation7 + $0x170] sm:$0xff]
    %v842 = vld [vmem:[#allocation7 + $0x178] sm:$0xff]
    %v843 = vld [vmem:[#allocation7 + $0x180] sm:$0xff]
    %v844 = vld [vmem:[#allocation7 + $0x188] sm:$0xff]
    %v845 = vld [vmem:[#allocation7 + $0x190] sm:$0xff]
    %v846 = vld [vmem:[#allocation7 + $0x198] sm:$0xff]
    %v847 = vld [vmem:[#allocation7 + $0x1a0] sm:$0xff]
    %v848 = vld [vmem:[#allocation7 + $0x1a8] sm:$0xff]
    %v849 = vld [vmem:[#allocation7 + $0x1b0] sm:$0xff]
    %v850 = vld [vmem:[#allocation7 + $0x1b8] sm:$0xff]
    %v851 = vld [vmem:[#allocation7 + $0x1c0] sm:$0xff]
    %v852 = vld [vmem:[#allocation7 + $0x1c8] sm:$0xff]
    %v853 = vld [vmem:[#allocation7 + $0x1d0] sm:$0xff]
    %v854 = vld [vmem:[#allocation7 + $0x1d8] sm:$0xff]
    %v855 = vld [vmem:[#allocation7 + $0x1e0] sm:$0xff]
    %v856 = vld [vmem:[#allocation7 + $0x1e8] sm:$0xff]
    %v857 = vld [vmem:[#allocation7 + $0x1f0] sm:$0xff]
    %v858 = vld [vmem:[#allocation7 + $0x1f8] sm:$0xff]
    %v859 = vld [vmem:[%s4] sm:$0xff]
    %v861 = vlaneseq
    %v862 = vshrl.u32 %v861, 7
    %v863 = vsub.s32 0, %v862
    %v864 = vrot.slane %v859, %v863
    %v865 = vlaneseq
    %v866 = vshrl.u32 %v865, 7
    %v867 = vsub.s32 1, %v866
    %v868 = vrot.slane %v859, %v867
    %v869 = vlaneseq
    %v870 = vshrl.u32 %v869, 7
    %v871 = vsub.s32 2, %v870
    %v872 = vrot.slane %v859, %v871
    %v873 = vlaneseq
    %v874 = vshrl.u32 %v873, 7
    %v875 = vsub.s32 3, %v874
    %v876 = vrot.slane %v859, %v875
    %v877 = vlaneseq
    %v878 = vshrl.u32 %v877, 7
    %v879 = vsub.s32 4, %v878
    %v880 = vrot.slane %v859, %v879
    %v881 = vlaneseq
    %v882 = vshrl.u32 %v881, 7
    %v883 = vsub.s32 5, %v882
    %v884 = vrot.slane %v859, %v883
    %v885 = vlaneseq
    %v886 = vshrl.u32 %v885, 7
    %v887 = vsub.s32 6, %v886
    %v888 = vrot.slane %v859, %v887
    %v889 = vlaneseq
    %v890 = vshrl.u32 %v889, 7
    %v891 = vsub.s32 7, %v890
    %v892 = vrot.slane %v859, %v891
    %v965 = vunpack.c.l.b16 %v795
    %v966 = vunpack.c.h.b16 %v795
    %v967 = vunpack.c.l.b16 %v796
    %v968 = vunpack.c.h.b16 %v796
    %v969 = vunpack.c.l.b16 %v797
    %v970 = vunpack.c.h.b16 %v797
    %v971 = vunpack.c.l.b16 %v798
    %v972 = vunpack.c.h.b16 %v798
    %v973 = vunpack.c.l.b16 %v799
    %v974 = vunpack.c.h.b16 %v799
    %v975 = vunpack.c.l.b16 %v800
    %v976 = vunpack.c.h.b16 %v800
    %v977 = vunpack.c.l.b16 %v801
    %v978 = vunpack.c.h.b16 %v801
    %v979 = vunpack.c.l.b16 %v802
    %v980 = vunpack.c.h.b16 %v802
    %v981 = vunpack.c.l.b16 %v803
    %v982 = vunpack.c.h.b16 %v803
    %v983 = vunpack.c.l.b16 %v804
    %v984 = vunpack.c.h.b16 %v804
    %v985 = vunpack.c.l.b16 %v805
    %v986 = vunpack.c.h.b16 %v805
    %v987 = vunpack.c.l.b16 %v806
    %v988 = vunpack.c.h.b16 %v806
    %v989 = vunpack.c.l.b16 %v807
    %v990 = vunpack.c.h.b16 %v807
    %v991 = vunpack.c.l.b16 %v808
    %v992 = vunpack.c.h.b16 %v808
    %v993 = vunpack.c.l.b16 %v809
    %v994 = vunpack.c.h.b16 %v809
    %v995 = vunpack.c.l.b16 %v810
    %v996 = vunpack.c.h.b16 %v810
    %v997 = vunpack.c.l.b16 %v811
    %v998 = vunpack.c.h.b16 %v811
    %v999 = vunpack.c.l.b16 %v812
    %v1000 = vunpack.c.h.b16 %v812
    %v1001 = vunpack.c.l.b16 %v813
    %v1002 = vunpack.c.h.b16 %v813
    %v1003 = vunpack.c.l.b16 %v814
    %v1004 = vunpack.c.h.b16 %v814
    %v1005 = vunpack.c.l.b16 %v815
    %v1006 = vunpack.c.h.b16 %v815
    %v1007 = vunpack.c.l.b16 %v816
    %v1008 = vunpack.c.h.b16 %v816
    %v1009 = vunpack.c.l.b16 %v817
    %v1010 = vunpack.c.h.b16 %v817
    %v1011 = vunpack.c.l.b16 %v818
    %v1012 = vunpack.c.h.b16 %v818
    %v1013 = vunpack.c.l.b16 %v819
    %v1014 = vunpack.c.h.b16 %v819
    %v1015 = vunpack.c.l.b16 %v820
    %v1016 = vunpack.c.h.b16 %v820
    %v1017 = vunpack.c.l.b16 %v821
    %v1018 = vunpack.c.h.b16 %v821
    %v1019 = vunpack.c.l.b16 %v822
    %v1020 = vunpack.c.h.b16 %v822
    %v1021 = vunpack.c.l.b16 %v823
    %v1022 = vunpack.c.h.b16 %v823
    %v1023 = vunpack.c.l.b16 %v824
    %v1024 = vunpack.c.h.b16 %v824
    %v1025 = vunpack.c.l.b16 %v825
    %v1026 = vunpack.c.h.b16 %v825
    %v1027 = vunpack.c.l.b16 %v826
    %v1028 = vunpack.c.h.b16 %v826
    %v1029 = vunpack.c.l.b16 %v827
    %v1030 = vunpack.c.h.b16 %v827
    %v1031 = vunpack.c.l.b16 %v828
    %v1032 = vunpack.c.h.b16 %v828
    %v1033 = vunpack.c.l.b16 %v829
    %v1034 = vunpack.c.h.b16 %v829
    %v1035 = vunpack.c.l.b16 %v830
    %v1036 = vunpack.c.h.b16 %v830
    %v1037 = vunpack.c.l.b16 %v831
    %v1038 = vunpack.c.h.b16 %v831
    %v1039 = vunpack.c.l.b16 %v832
    %v1040 = vunpack.c.h.b16 %v832
    %v1041 = vunpack.c.l.b16 %v833
    %v1042 = vunpack.c.h.b16 %v833
    %v1043 = vunpack.c.l.b16 %v834
    %v1044 = vunpack.c.h.b16 %v834
    %v1045 = vunpack.c.l.b16 %v835
    %v1046 = vunpack.c.h.b16 %v835
    %v1047 = vunpack.c.l.b16 %v836
    %v1048 = vunpack.c.h.b16 %v836
    %v1049 = vunpack.c.l.b16 %v837
    %v1050 = vunpack.c.h.b16 %v837
    %v1051 = vunpack.c.l.b16 %v838
    %v1052 = vunpack.c.h.b16 %v838
    %v1053 = vunpack.c.l.b16 %v839
    %v1054 = vunpack.c.h.b16 %v839
    %v1055 = vunpack.c.l.b16 %v840
    %v1056 = vunpack.c.h.b16 %v840
    %v1057 = vunpack.c.l.b16 %v841
    %v1058 = vunpack.c.h.b16 %v841
    %v1059 = vunpack.c.l.b16 %v842
    %v1060 = vunpack.c.h.b16 %v842
    %v1061 = vunpack.c.l.b16 %v843
    %v1062 = vunpack.c.h.b16 %v843
    %v1063 = vunpack.c.l.b16 %v844
    %v1064 = vunpack.c.h.b16 %v844
    %v1065 = vunpack.c.l.b16 %v845
    %v1066 = vunpack.c.h.b16 %v845
    %v1067 = vunpack.c.l.b16 %v846
    %v1068 = vunpack.c.h.b16 %v846
    %v1069 = vunpack.c.l.b16 %v847
    %v1070 = vunpack.c.h.b16 %v847
    %v1071 = vunpack.c.l.b16 %v848
    %v1072 = vunpack.c.h.b16 %v848
    %v1073 = vunpack.c.l.b16 %v849
    %v1074 = vunpack.c.h.b16 %v849
    %v1075 = vunpack.c.l.b16 %v850
    %v1076 = vunpack.c.h.b16 %v850
    %v1077 = vunpack.c.l.b16 %v851
    %v1078 = vunpack.c.h.b16 %v851
    %v1079 = vunpack.c.l.b16 %v852
    %v1080 = vunpack.c.h.b16 %v852
    %v1081 = vunpack.c.l.b16 %v853
    %v1082 = vunpack.c.h.b16 %v853
    %v1083 = vunpack.c.l.b16 %v854
    %v1084 = vunpack.c.h.b16 %v854
    %v1085 = vunpack.c.l.b16 %v855
    %v1086 = vunpack.c.h.b16 %v855
    %v1087 = vunpack.c.l.b16 %v856
    %v1088 = vunpack.c.h.b16 %v856
    %v1089 = vunpack.c.l.b16 %v857
    %v1090 = vunpack.c.h.b16 %v857
    %v1091 = vunpack.c.l.b16 %v858
    %v1092 = vunpack.c.h.b16 %v858
    %v1093 = vpack.c.b16 %v973, %v965
    %v1094 = vpack.c.b16 %v974, %v966
    %v1095 = vpack.c.b16 %v975, %v967
    %v1096 = vpack.c.b16 %v976, %v968
    %v1097 = vpack.c.b16 %v977, %v969
    %v1098 = vpack.c.b16 %v978, %v970
    %v1099 = vpack.c.b16 %v979, %v971
    %v1100 = vpack.c.b16 %v980, %v972
    %v1101 = vpack.c.b16 %v989, %v981
    %v1102 = vpack.c.b16 %v990, %v982
    %v1103 = vpack.c.b16 %v991, %v983
    %v1104 = vpack.c.b16 %v992, %v984
    %v1105 = vpack.c.b16 %v993, %v985
    %v1106 = vpack.c.b16 %v994, %v986
    %v1107 = vpack.c.b16 %v995, %v987
    %v1108 = vpack.c.b16 %v996, %v988
    %v1109 = vpack.c.b16 %v1005, %v997
    %v1110 = vpack.c.b16 %v1006, %v998
    %v1111 = vpack.c.b16 %v1007, %v999
    %v1112 = vpack.c.b16 %v1008, %v1000
    %v1113 = vpack.c.b16 %v1009, %v1001
    %v1114 = vpack.c.b16 %v1010, %v1002
    %v1115 = vpack.c.b16 %v1011, %v1003
    %v1116 = vpack.c.b16 %v1012, %v1004
    %v1117 = vpack.c.b16 %v1021, %v1013
    %v1118 = vpack.c.b16 %v1022, %v1014
    %v1119 = vpack.c.b16 %v1023, %v1015
    %v1120 = vpack.c.b16 %v1024, %v1016
    %v1121 = vpack.c.b16 %v1025, %v1017
    %v1122 = vpack.c.b16 %v1026, %v1018
    %v1123 = vpack.c.b16 %v1027, %v1019
    %v1124 = vpack.c.b16 %v1028, %v1020
    %v1125 = vpack.c.b16 %v1037, %v1029
    %v1126 = vpack.c.b16 %v1038, %v1030
    %v1127 = vpack.c.b16 %v1039, %v1031
    %v1128 = vpack.c.b16 %v1040, %v1032
    %v1129 = vpack.c.b16 %v1041, %v1033
    %v1130 = vpack.c.b16 %v1042, %v1034
    %v1131 = vpack.c.b16 %v1043, %v1035
    %v1132 = vpack.c.b16 %v1044, %v1036
    %v1133 = vpack.c.b16 %v1053, %v1045
    %v1134 = vpack.c.b16 %v1054, %v1046
    %v1135 = vpack.c.b16 %v1055, %v1047
    %v1136 = vpack.c.b16 %v1056, %v1048
    %v1137 = vpack.c.b16 %v1057, %v1049
    %v1138 = vpack.c.b16 %v1058, %v1050
    %v1139 = vpack.c.b16 %v1059, %v1051
    %v1140 = vpack.c.b16 %v1060, %v1052
    %v1141 = vpack.c.b16 %v1069, %v1061
    %v1142 = vpack.c.b16 %v1070, %v1062
    %v1143 = vpack.c.b16 %v1071, %v1063
    %v1144 = vpack.c.b16 %v1072, %v1064
    %v1145 = vpack.c.b16 %v1073, %v1065
    %v1146 = vpack.c.b16 %v1074, %v1066
    %v1147 = vpack.c.b16 %v1075, %v1067
    %v1148 = vpack.c.b16 %v1076, %v1068
    %v1149 = vpack.c.b16 %v1085, %v1077
    %v1150 = vpack.c.b16 %v1086, %v1078
    %v1151 = vpack.c.b16 %v1087, %v1079
    %v1152 = vpack.c.b16 %v1088, %v1080
    %v1153 = vpack.c.b16 %v1089, %v1081
    %v1154 = vpack.c.b16 %v1090, %v1082
    %v1155 = vpack.c.b16 %v1091, %v1083
    %v1156 = vpack.c.b16 %v1092, %v1084
    %1221 = vmatprep.subr.bf16.mxu0 %v1094
    %1222 = vmatpush1.bf16.msra.mxu0 %v1093
    %1223 = vmatprep.subr.bf16.mxu0 %v1102
    %1224 = vmatpush1.bf16.msra.mxu0 %v1101
    %1225 = vmatprep.subr.bf16.mxu0 %v1110
    %1226 = vmatpush1.bf16.msra.mxu0 %v1109
    %1227 = vmatprep.subr.bf16.mxu0 %v1118
    %1228 = vmatpush1.bf16.msra.mxu0 %v1117
    %1229 = vmatprep.subr.bf16.mxu0 %v1126
    %1230 = vmatpush1.bf16.msra.mxu0 %v1125
    %1231 = vmatprep.subr.bf16.mxu0 %v1134
    %1232 = vmatpush1.bf16.msra.mxu0 %v1133
    %1233 = vmatprep.subr.bf16.mxu0 %v1142
    %1234 = vmatpush1.bf16.msra.mxu0 %v1141
    %1235 = vmatprep.subr.bf16.mxu0 %v1150
    %1236 = vmatpush1.bf16.msra.mxu0 %v1149
    %1237 = vmatprep.subr.bf16.mxu0 0
    %1238 = vmatpush1.bf16.msra.mxu0 0
    %1239 = vmatprep.subr.bf16.mxu0 0
    %1240 = vmatpush1.bf16.msra.mxu0 0
    %1241 = vmatprep.subr.bf16.mxu0 0
    %1242 = vmatpush1.bf16.msra.mxu0 0
    %1243 = vmatprep.subr.bf16.mxu0 0
    %1244 = vmatpush1.bf16.msra.mxu0 0
    %1245 = vmatprep.subr.bf16.mxu0 0
    %1246 = vmatpush1.bf16.msra.mxu0 0
    %1247 = vmatprep.subr.bf16.mxu0 0
    %1248 = vmatpush1.bf16.msra.mxu0 0
    %1249 = vmatprep.subr.bf16.mxu0 0
    %1250 = vmatpush1.bf16.msra.mxu0 0
    %1251 = vmatprep.subr.bf16.mxu0 0
    %1252 = vmatpush1.bf16.msra.mxu0 0
    %1253 = vmatprep.mubr.bf16.mxu0 0
    %1254 = vmatmul.mubr.bf16.gmra.mrb[0].mxu0 %v794
    %v1255 = vpop.f32.mrb[0].mxu0
    %v1256 = vadd.f32 %v864, %v1255
    %v1257 = vpop.f32.mrb[0].mxu0
    %v1258 = vadd.f32 %v868, %v1257
    %v1259 = vpop.f32.mrb[0].mxu0
    %v1260 = vpop.f32.mrb[0].mxu0
    %1261 = vdwg.mxu0
    %1262 = vmatprep.subr.bf16.mxu0 %v1096
    %1263 = vmatpush1.bf16.msra.mxu0 %v1095
    %1264 = vmatprep.subr.bf16.mxu0 %v1104
    %1265 = vmatpush1.bf16.msra.mxu0 %v1103
    %1266 = vmatprep.subr.bf16.mxu0 %v1112
    %1267 = vmatpush1.bf16.msra.mxu0 %v1111
    %1268 = vmatprep.subr.bf16.mxu0 %v1120
    %1269 = vmatpush1.bf16.msra.mxu0 %v1119
    %1270 = vmatprep.subr.bf16.mxu0 %v1128
    %1271 = vmatpush1.bf16.msra.mxu0 %v1127
    %1272 = vmatprep.subr.bf16.mxu0 %v1136
    %1273 = vmatpush1.bf16.msra.mxu0 %v1135
    %1274 = vmatprep.subr.bf16.mxu0 %v1144
    %1275 = vmatpush1.bf16.msra.mxu0 %v1143
    %1276 = vmatprep.subr.bf16.mxu0 %v1152
    %1277 = vmatpush1.bf16.msra.mxu0 %v1151
    %1278 = vmatprep.subr.bf16.mxu0 0
    %1279 = vmatpush1.bf16.msra.mxu0 0
    %1280 = vmatprep.subr.bf16.mxu0 0
    %1281 = vmatpush1.bf16.msra.mxu0 0
    %1282 = vmatprep.subr.bf16.mxu0 0
    %1283 = vmatpush1.bf16.msra.mxu0 0
    %1284 = vmatprep.subr.bf16.mxu0 0
    %1285 = vmatpush1.bf16.msra.mxu0 0
    %1286 = vmatprep.subr.bf16.mxu0 0
    %1287 = vmatpush1.bf16.msra.mxu0 0
    %1288 = vmatprep.subr.bf16.mxu0 0
    %1289 = vmatpush1.bf16.msra.mxu0 0
    %1290 = vmatprep.subr.bf16.mxu0 0
    %1291 = vmatpush1.bf16.msra.mxu0 0
    %1292 = vmatprep.subr.bf16.mxu0 0
    %1293 = vmatpush1.bf16.msra.mxu0 0
    %1294 = vmatprep.mubr.bf16.mxu0 0
    %1295 = vmatmul.mubr.bf16.gmra.mrb[0].mxu0 %v794
    %v1296 = vpop.f32.mrb[0].mxu0
    %v1297 = vadd.f32 %v872, %v1296
    %v1298 = vpop.f32.mrb[0].mxu0
    %v1299 = vadd.f32 %v876, %v1298
    %v1300 = vpop.f32.mrb[0].mxu0
    %v1301 = vpop.f32.mrb[0].mxu0
    %1302 = vdwg.mxu0
    %1303 = vmatprep.subr.bf16.mxu0 %v1098
    %1304 = vmatpush1.bf16.msra.mxu0 %v1097
    %1305 = vmatprep.subr.bf16.mxu0 %v1106
    %1306 = vmatpush1.bf16.msra.mxu0 %v1105
    %1307 = vmatprep.subr.bf16.mxu0 %v1114
    %1308 = vmatpush1.bf16.msra.mxu0 %v1113
    %1309 = vmatprep.subr.bf16.mxu0 %v1122
    %1310 = vmatpush1.bf16.msra.mxu0 %v1121
    %1311 = vmatprep.subr.bf16.mxu0 %v1130
    %1312 = vmatpush1.bf16.msra.mxu0 %v1129
    %1313 = vmatprep.subr.bf16.mxu0 %v1138
    %1314 = vmatpush1.bf16.msra.mxu0 %v1137
    %1315 = vmatprep.subr.bf16.mxu0 %v1146
    %1316 = vmatpush1.bf16.msra.mxu0 %v1145
    %1317 = vmatprep.subr.bf16.mxu0 %v1154
    %1318 = vmatpush1.bf16.msra.mxu0 %v1153
    %1319 = vmatprep.subr.bf16.mxu0 0
    %1320 = vmatpush1.bf16.msra.mxu0 0
    %1321 = vmatprep.subr.bf16.mxu0 0
    %1322 = vmatpush1.bf16.msra.mxu0 0
    %1323 = vmatprep.subr.bf16.mxu0 0
    %1324 = vmatpush1.bf16.msra.mxu0 0
    %1325 = vmatprep.subr.bf16.mxu0 0
    %1326 = vmatpush1.bf16.msra.mxu0 0
    %1327 = vmatprep.subr.bf16.mxu0 0
    %1328 = vmatpush1.bf16.msra.mxu0 0
    %1329 = vmatprep.subr.bf16.mxu0 0
    %1330 = vmatpush1.bf16.msra.mxu0 0
    %1331 = vmatprep.subr.bf16.mxu0 0
    %1332 = vmatpush1.bf16.msra.mxu0 0
    %1333 = vmatprep.subr.bf16.mxu0 0
    %1334 = vmatpush1.bf16.msra.mxu0 0
    %1335 = vmatprep.mubr.bf16.mxu0 0
    %1336 = vmatmul.mubr.bf16.gmra.mrb[0].mxu0 %v794
    %v1337 = vpop.f32.mrb[0].mxu0
    %v1338 = vadd.f32 %v880, %v1337
    %v1339 = vpop.f32.mrb[0].mxu0
    %v1340 = vadd.f32 %v884, %v1339
    %v1341 = vpop.f32.mrb[0].mxu0
    %v1342 = vpop.f32.mrb[0].mxu0
    %1343 = vdwg.mxu0
    %1344 = vmatprep.subr.bf16.mxu0 %v1100
    %1345 = vmatpush1.bf16.msra.mxu0 %v1099
    %1346 = vmatprep.subr.bf16.mxu0 %v1108
    %1347 = vmatpush1.bf16.msra.mxu0 %v1107
    %1348 = vmatprep.subr.bf16.mxu0 %v1116
    %1349 = vmatpush1.bf16.msra.mxu0 %v1115
    %1350 = vmatprep.subr.bf16.mxu0 %v1124
    %1351 = vmatpush1.bf16.msra.mxu0 %v1123
    %1352 = vmatprep.subr.bf16.mxu0 %v1132
    %1353 = vmatpush1.bf16.msra.mxu0 %v1131
    %1354 = vmatprep.subr.bf16.mxu0 %v1140
    %1355 = vmatpush1.bf16.msra.mxu0 %v1139
    %1356 = vmatprep.subr.bf16.mxu0 %v1148
    %1357 = vmatpush1.bf16.msra.mxu0 %v1147
    %1358 = vmatprep.subr.bf16.mxu0 %v1156
    %1359 = vmatpush1.bf16.msra.mxu0 %v1155
    %1360 = vmatprep.subr.bf16.mxu0 0
    %1361 = vmatpush1.bf16.msra.mxu0 0
    %1362 = vmatprep.subr.bf16.mxu0 0
    %1363 = vmatpush1.bf16.msra.mxu0 0
    %1364 = vmatprep.subr.bf16.mxu0 0
    %1365 = vmatpush1.bf16.msra.mxu0 0
    %1366 = vmatprep.subr.bf16.mxu0 0
    %1367 = vmatpush1.bf16.msra.mxu0 0
    %1368 = vmatprep.subr.bf16.mxu0 0
    %1369 = vmatpush1.bf16.msra.mxu0 0
    %1370 = vmatprep.subr.bf16.mxu0 0
    %1371 = vmatpush1.bf16.msra.mxu0 0
    %1372 = vmatprep.subr.bf16.mxu0 0
    %1373 = vmatpush1.bf16.msra.mxu0 0
    %1374 = vmatprep.subr.bf16.mxu0 0
    %1375 = vmatpush1.bf16.msra.mxu0 0
    %1376 = vmatprep.mubr.bf16.mxu0 0
    %1377 = vmatmul.mubr.bf16.gmra.mrb[0].mxu0 %v794
    %v1378 = vpop.f32.mrb[0].mxu0
    %v1379 = vadd.f32 %v888, %v1378
    %v1380 = vpop.f32.mrb[0].mxu0
    %v1381 = vadd.f32 %v892, %v1380
    %v1382 = vpop.f32.mrb[0].mxu0
    %v1383 = vpop.f32.mrb[0].mxu0
    %1384 = vdwg.mxu0
    %v1393 = vcombine.low %v1256, %v1258
    %v1394 = vcombine.low %v1297, %v1299
    %v1396 = vunpack.c.l.s4 1983009808
    %v1397 = vunpack.c.0.s8 %v1396
    %v1398 = vlaneseq
    %v1399 = vshrl.u32 %v1398, 7
    %v1400 = vsub.s32 %v1397, %v1399
    %v1401 = vrot.slane %v1393, %v1400
    %v1403 = vunpack.c.l.s4 1983009808
    %v1404 = vunpack.c.0.s8 %v1403
    %v1405 = vlaneseq
    %v1406 = vshrl.u32 %v1405, 7
    %v1407 = vsub.s32 %v1404, %v1406
    %v1408 = vrot.slane %v1394, %v1407
    %v1409 = vcombine.low %v1401, %v1408
    %v1410 = vcombine.low %v1338, %v1340
    %v1411 = vcombine.low %v1379, %v1381
    %v1413 = vunpack.c.l.s4 1983009808
    %v1414 = vunpack.c.0.s8 %v1413
    %v1415 = vlaneseq
    %v1416 = vshrl.u32 %v1415, 7
    %v1417 = vsub.s32 %v1414, %v1416
    %v1418 = vrot.slane %v1410, %v1417
    %v1420 = vunpack.c.l.s4 1983009808
    %v1421 = vunpack.c.0.s8 %v1420
    %v1422 = vlaneseq
    %v1423 = vshrl.u32 %v1422, 7
    %v1424 = vsub.s32 %v1421, %v1423
    %v1425 = vrot.slane %v1411, %v1424
    %v1426 = vcombine.low %v1418, %v1425
    %1429 = vst [vmem:[#allocation8] sm:$0xff] %v1409
    %1430 = vst [vmem:[#allocation8 + $0x8] sm:$0xff] %v1426
    // Predicated region
    $region34: #{tpu_custom_call.1} parent=1 // pred_check
      _
    $region35: #{tpu_custom_call.1} parent=1 // pred_check_branch
      %1432 = sbr.rel (0) target = $region37
    $region36: #{tpu_custom_call.1} parent=1 // pred_region
      %s1434 = ssub.s32 256, 256
      %1435 = vsyncadd [#allocation4], %s1434
      %s1437 = sshll.u32 [#allocation8], 4
      %s1438 = int_to_ptr.vmem [resolvable:$true] %s1437
      %1440 = dma.vmem_to_hbm [thread:$0]  %s1438, 256, %s5, [#allocation4]
    $region37: #{tpu_custom_call.1} parent=1 // pred_fallthru
      _
    // Predicated region
    $region38: #{tpu_custom_call.1} parent=1 // pred_check
      _
    $region39: #{tpu_custom_call.1} parent=1 // pred_check_branch
      %1442 = sbr.rel (0) target = $region41
    $region40: #{tpu_custom_call.1} parent=1 // pred_region
      %1443 = dma.done [#allocation4], 256
    $region41: #{tpu_custom_call.1} parent=1 // pred_fallthru
      _
    %1444 = vsyncpa [#allocation3], 1
    %1445 = vsyncpa [#allocation6], 1
    %1446 = vsyncpa [#allocation4], 1

// kernel: tpu_custom_call.1
$region0: #{tpu_custom_call.1}
  #allocation0 [shape = 'u32[]', space=smem, size = 0x4, offset = 0x4, fixed_abs, tag = 'smem constant byte address 0x4 - core index']
  #allocation1 [shape = 'u32[144,128]{1,0:T(1,128)}', space=vmem, size = 0x12000, scoped, tag = 'internal scratch']
  %s0 = inlined_call_operand.hbm [shape: f32[2,1024], index: 0, kind: input, shape index: {}]
  %s1 = inlined_call_operand.hbm [shape: bf16[1024,128], index: 1, kind: input, shape index: {}]
  %s2 = inlined_call_operand.vmem [shape: f32[1,128], index: 2, kind: input, shape index: {}]
  %s3 = inlined_call_operand.hbm [shape: bf16[128,1024], index: 3, kind: input, shape index: {}]
  %s4 = inlined_call_operand.vmem [shape: f32[1,1024], index: 4, kind: input, shape index: {}]
  %s5 = inlined_call_operand.hbm [shape: f32[2,1024], index: 5, kind: output, shape index: {}]
  %s6 = sld [smem:[#allocation0]]
  $region42: #{tpu_custom_call.1} parent=0
    _
  %s8 = ssub.s32 1, %s6
  %s9 = scalar_select 0, %s8, %s6
  $region1: #{tpu_custom_call.1} parent=0
    #allocation2 [shape = 'u8[8192]{0}', space=vmem, size = 0x2000, scoped, tag = 'input window, operand 0, single buffered']
    #allocation3 [shape = 's32[1]{0}', space=sflag, size = 0x4, scoped, tag = 'scoped memory for tpu_custom_call.1']
    #allocation4 [shape = 's32[1]{0}', space=sflag, size = 0x4, scoped, tag = 'scoped memory for tpu_custom_call.1']
    #allocation5 [shape = 'u8[262144]{0}', space=vmem, size = 0x40000, scoped, tag = 'input window, operand 1, single buffered']
    #allocation6 [shape = 's32[1]{0}', space=sflag, size = 0x4, scoped, tag = 'scoped memory for tpu_custom_call.1']
    #allocation7 [shape = 'u8[262144]{0}', space=vmem, size = 0x40000, scoped, tag = 'input window, operand 3, single buffered']
    #allocation8 [shape = 'u8[8192]{0}', space=vmem, size = 0x2000, scoped, tag = 'output window, operand 0, single buffered']
    %10 = vsyncpa [#allocation3], 0
    %11 = vsyncpa [#allocation6], 0
    %12 = vsyncpa [#allocation4], 0
    // Predicated region
    $region2: #{tpu_custom_call.1} parent=1 // pred_check
      _
    $region3: #{tpu_custom_call.1} parent=1 // pred_check_branch
      %14 = sbr.rel (0) target = $region5
    $region4: #{tpu_custom_call.1} parent=1 // pred_region
      %s16 = ssub.s32 256, 256
      %17 = vsyncadd [#allocation3], %s16
      %s19 = sshll.u32 [#allocation2], 4
      %s20 = int_to_ptr.vmem [resolvable:$true] %s19
      %22 = dma.hbm_to_vmem [thread:$0]  %s0, 256, %s20, [#allocation3]
    $region5: #{tpu_custom_call.1} parent=1 // pred_fallthru
      _
    // Predicated region
    $region6: #{tpu_custom_call.1} parent=1 // pred_check
      _
    $region7: #{tpu_custom_call.1} parent=1 // pred_check_branch
      %24 = sbr.rel (0) target = $region9
    $region8: #{tpu_custom_call.1} parent=1 // pred_region
      %s26 = ssub.s32 8192, 8192
      %27 = vsyncadd [#allocation6], %s26
      %s28 = sshll.u32 [#allocation5], 4
      %s29 = int_to_ptr.vmem [resolvable:$true] %s28
      %34 = dma.hbm_to_vmem [thread:$0]  %s1, 8192, %s29, [#allocation6], 64, 64, 4
    $region9: #{tpu_custom_call.1} parent=1 // pred_fallthru
      _
    // Predicated region
    $region10: #{tpu_custom_call.1} parent=1 // pred_check
      _
    $region11: #{tpu_custom_call.1} parent=1 // pred_check_branch
      %36 = sbr.rel (0) target = $region13
    $region12: #{tpu_custom_call.1} parent=1 // pred_region
      _
    $region13: #{tpu_custom_call.1} parent=1 // pred_fallthru
      _
    // Predicated region
    $region14: #{tpu_custom_call.1} parent=1 // pred_check
      _
    $region15: #{tpu_custom_call.1} parent=1 // pred_check_branch
      %38 = sbr.rel (0) target = $region17
    $region16: #{tpu_custom_call.1} parent=1 // pred_region
      %s40 = ssub.s32 8192, 8192
      %41 = vsyncadd [#allocation6], %s40
      %s42 = sshll.u32 [#allocation7], 4
      %s43 = int_to_ptr.vmem [resolvable:$true] %s42
      %48 = dma.hbm_to_vmem [thread:$0]  %s3, 8192, %s43, [#allocation6], 512, 512, 32
    $region17: #{tpu_custom_call.1} parent=1 // pred_fallthru
      _
    // Predicated region
    $region18: #{tpu_custom_call.1} parent=1 // pred_check
      _
    $region19: #{tpu_custom_call.1} parent=1 // pred_check_branch
      %50 = sbr.rel (0) target = $region21
    $region20: #{tpu_custom_call.1} parent=1 // pred_region
      _
    $region21: #{tpu_custom_call.1} parent=1 // pred_fallthru
      _
    // Predicated region
    $region22: #{tpu_custom_call.1} parent=1 // pred_check
      _
    $region23: #{tpu_custom_call.1} parent=1 // pred_check_branch
      %52 = sbr.rel (0) target = $region25
    $region24: #{tpu_custom_call.1} parent=1 // pred_region
      %53 = dma.done [#allocation3], 256
    $region25: #{tpu_custom_call.1} parent=1 // pred_fallthru
      _
    // Predicated region
    $region26: #{tpu_custom_call.1} parent=1 // pred_check
      _
    $region27: #{tpu_custom_call.1} parent=1 // pred_check_branch
      %55 = sbr.rel (0) target = $region29
    $region28: #{tpu_custom_call.1} parent=1 // pred_region
      %56 = dma.done [#allocation6], 8192
    $region29: #{tpu_custom_call.1} parent=1 // pred_fallthru
      _
    // Predicated region
    $region30: #{tpu_custom_call.1} parent=1 // pred_check
      _
    $region31: #{tpu_custom_call.1} parent=1 // pred_check_branch
      %58 = sbr.rel (0) target = $region33
    $region32: #{tpu_custom_call.1} parent=1 // pred_region
      %59 = dma.done [#allocation6], 8192
    $region33: #{tpu_custom_call.1} parent=1 // pred_fallthru
      _
    %v61 = vld [vmem:[#allocation2] sm:$0xff]
    %v62 = vld [vmem:[#allocation2 + $0x8] sm:$0xff]
    %v65 = vcombine.high %v61, %v61
    %v67 = vunpack.c.l.s4 1983009808
    %v68 = vunpack.c.0.s8 %v67
    %v69 = vlaneseq
    %v70 = vshrl.u32 %v69, 7
    %v71 = vsub.s32 %v68, %v70
    %v72 = vrot.slane %v61, %v71
    %v74 = vunpack.c.l.s4 1983009808
    %v75 = vunpack.c.0.s8 %v74
    %v76 = vlaneseq
    %v77 = vshrl.u32 %v76, 7
    %v78 = vsub.s32 %v75, %v77
    %v79 = vrot.slane %v65, %v78
    %v80 = vcombine.high %v72, %v72
    %v81 = vcombine.high %v79, %v79
    %v82 = vcombine.high %v62, %v62
    %v84 = vunpack.c.l.s4 1983009808
    %v85 = vunpack.c.0.s8 %v84
    %v86 = vlaneseq
    %v87 = vshrl.u32 %v86, 7
    %v88 = vsub.s32 %v85, %v87
    %v89 = vrot.slane %v62, %v88
    %v91 = vunpack.c.l.s4 1983009808
    %v92 = vunpack.c.0.s8 %v91
    %v93 = vlaneseq
    %v94 = vshrl.u32 %v93, 7
    %v95 = vsub.s32 %v92, %v94
    %v96 = vrot.slane %v82, %v95
    %v97 = vcombine.high %v89, %v89
    %v98 = vcombine.high %v96, %v96
    %v107 = vpack.c.bf16 %v72, %v72
    %v108 = vpack.c.bf16 %v80, %v80
    %v109 = vpack.c.bf16 %v79, %v79
    %v110 = vpack.c.bf16 %v81, %v81
    %v111 = vpack.c.bf16 %v89, %v89
    %v112 = vpack.c.bf16 %v97, %v97
    %v113 = vpack.c.bf16 %v96, %v96
    %v114 = vpack.c.bf16 %v98, %v98
    %v115 = vld [vmem:[#allocation5] sm:$0xf]
    %v116 = vld [vmem:[#allocation5 + $0x4] sm:$0xf]
    %v117 = vld [vmem:[#allocation5 + $0x8] sm:$0xf]
    %v118 = vld [vmem:[#allocation5 + $0xc] sm:$0xf]
    %v119 = vld [vmem:[#allocation5 + $0x10] sm:$0xf]
    %v120 = vld [vmem:[#allocation5 + $0x14] sm:$0xf]
    %v121 = vld [vmem:[#allocation5 + $0x18] sm:$0xf]
    %v122 = vld [vmem:[#allocation5 + $0x1c] sm:$0xf]
    %v123 = vld [vmem:[#allocation5 + $0x20] sm:$0xf]
    %v124 = vld [vmem:[#allocation5 + $0x24] sm:$0xf]
    %v125 = vld [vmem:[#allocation5 + $0x28] sm:$0xf]
    %v126 = vld [vmem:[#allocation5 + $0x2c] sm:$0xf]
    %v127 = vld [vmem:[#allocation5 + $0x30] sm:$0xf]
    %v128 = vld [vmem:[#allocation5 + $0x34] sm:$0xf]
    %v129 = vld [vmem:[#allocation5 + $0x38] sm:$0xf]
    %v130 = vld [vmem:[#allocation5 + $0x3c] sm:$0xf]
    %v131 = vld [vmem:[#allocation5 + $0x40] sm:$0xf]
    %v132 = vld [vmem:[#allocation5 + $0x44] sm:$0xf]
    %v133 = vld [vmem:[#allocation5 + $0x48] sm:$0xf]
    %v134 = vld [vmem:[#allocation5 + $0x4c] sm:$0xf]
    %v135 = vld [vmem:[#allocation5 + $0x50] sm:$0xf]
    %v136 = vld [vmem:[#allocation5 + $0x54] sm:$0xf]
    %v137 = vld [vmem:[#allocation5 + $0x58] sm:$0xf]
    %v138 = vld [vmem:[#allocation5 + $0x5c] sm:$0xf]
    %v139 = vld [vmem:[#allocation5 + $0x60] sm:$0xf]
    %v140 = vld [vmem:[#allocation5 + $0x64] sm:$0xf]
    %v141 = vld [vmem:[#allocation5 + $0x68] sm:$0xf]
    %v142 = vld [vmem:[#allocation5 + $0x6c] sm:$0xf]
    %v143 = vld [vmem:[#allocation5 + $0x70] sm:$0xf]
    %v144 = vld [vmem:[#allocation5 + $0x74] sm:$0xf]
    %v145 = vld [vmem:[#allocation5 + $0x78] sm:$0xf]
    %v146 = vld [vmem:[#allocation5 + $0x7c] sm:$0xf]
    %v147 = vld [vmem:[#allocation5 + $0x80] sm:$0xf]
    %v148 = vld [vmem:[#allocation5 + $0x84] sm:$0xf]
    %v149 = vld [vmem:[#allocation5 + $0x88] sm:$0xf]
    %v150 = vld [vmem:[#allocation5 + $0x8c] sm:$0xf]
    %v151 = vld [vmem:[#allocation5 + $0x90] sm:$0xf]
    %v152 = vld [vmem:[#allocation5 + $0x94] sm:$0xf]
    %v153 = vld [vmem:[#allocation5 + $0x98] sm:$0xf]
    %v154 = vld [vmem:[#allocation5 + $0x9c] sm:$0xf]
    %v155 = vld [vmem:[#allocation5 + $0xa0] sm:$0xf]
    %v156 = vld [vmem:[#allocation5 + $0xa4] sm:$0xf]
    %v157 = vld [vmem:[#allocation5 + $0xa8] sm:$0xf]
    %v158 = vld [vmem:[#allocation5 + $0xac] sm:$0xf]
    %v159 = vld [vmem:[#allocation5 + $0xb0] sm:$0xf]
    %v160 = vld [vmem:[#allocation5 + $0xb4] sm:$0xf]
    %v161 = vld [vmem:[#allocation5 + $0xb8] sm:$0xf]
    %v162 = vld [vmem:[#allocation5 + $0xbc] sm:$0xf]
    %v163 = vld [vmem:[#allocation5 + $0xc0] sm:$0xf]
    %v164 = vld [vmem:[#allocation5 + $0xc4] sm:$0xf]
    %v165 = vld [vmem:[#allocation5 + $0xc8] sm:$0xf]
    %v166 = vld [vmem:[#allocation5 + $0xcc] sm:$0xf]
    %v167 = vld [vmem:[#allocation5 + $0xd0] sm:$0xf]
    %v168 = vld [vmem:[#allocation5 + $0xd4] sm:$0xf]
    %v169 = vld [vmem:[#allocation5 + $0xd8] sm:$0xf]
    %v170 = vld [vmem:[#allocation5 + $0xdc] sm:$0xf]
    %v171 = vld [vmem:[#allocation5 + $0xe0] sm:$0xf]
    %v172 = vld [vmem:[#allocation5 + $0xe4] sm:$0xf]
    %v173 = vld [vmem:[#allocation5 + $0xe8] sm:$0xf]
    %v174 = vld [vmem:[#allocation5 + $0xec] sm:$0xf]
    %v175 = vld [vmem:[#allocation5 + $0xf0] sm:$0xf]
    %v176 = vld [vmem:[#allocation5 + $0xf4] sm:$0xf]
    %v177 = vld [vmem:[#allocation5 + $0xf8] sm:$0xf]
    %v178 = vld [vmem:[#allocation5 + $0xfc] sm:$0xf]
    %v179 = vld [vmem:[#allocation5 + $0x100] sm:$0xf]
    %v180 = vld [vmem:[#allocation5 + $0x104] sm:$0xf]
    %v181 = vld [vmem:[#allocation5 + $0x108] sm:$0xf]
    %v182 = vld [vmem:[#allocation5 + $0x10c] sm:$0xf]
    %v183 = vld [vmem:[#allocation5 + $0x110] sm:$0xf]
    %v184 = vld [vmem:[#allocation5 + $0x114] sm:$0xf]
    %v185 = vld [vmem:[#allocation5 + $0x118] sm:$0xf]
    %v186 = vld [vmem:[#allocation5 + $0x11c] sm:$0xf]
    %v187 = vld [vmem:[#allocation5 + $0x120] sm:$0xf]
    %v188 = vld [vmem:[#allocation5 + $0x124] sm:$0xf]
    %v189 = vld [vmem:[#allocation5 + $0x128] sm:$0xf]
    %v190 = vld [vmem:[#allocation5 + $0x12c] sm:$0xf]
    %v191 = vld [vmem:[#allocation5 + $0x130] sm:$0xf]
    %v192 = vld [vmem:[#allocation5 + $0x134] sm:$0xf]
    %v193 = vld [vmem:[#allocation5 + $0x138] sm:$0xf]
    %v194 = vld [vmem:[#allocation5 + $0x13c] sm:$0xf]
    %v195 = vld [vmem:[#allocation5 + $0x140] sm:$0xf]
    %v196 = vld [vmem:[#allocation5 + $0x144] sm:$0xf]
    %v197 = vld [vmem:[#allocation5 + $0x148] sm:$0xf]
    %v198 = vld [vmem:[#allocation5 + $0x14c] sm:$0xf]
    %v199 = vld [vmem:[#allocation5 + $0x150] sm:$0xf]
    %v200 = vld [vmem:[#allocation5 + $0x154] sm:$0xf]
    %v201 = vld [vmem:[#allocation5 + $0x158] sm:$0xf]
    %v202 = vld [vmem:[#allocation5 + $0x15c] sm:$0xf]
    %v203 = vld [vmem:[#allocation5 + $0x160] sm:$0xf]
    %v204 = vld [vmem:[#allocation5 + $0x164] sm:$0xf]
    %v205 = vld [vmem:[#allocation5 + $0x168] sm:$0xf]
    %v206 = vld [vmem:[#allocation5 + $0x16c] sm:$0xf]
    %v207 = vld [vmem:[#allocation5 + $0x170] sm:$0xf]
    %v208 = vld [vmem:[#allocation5 + $0x174] sm:$0xf]
    %v209 = vld [vmem:[#allocation5 + $0x178] sm:$0xf]
    %v210 = vld [vmem:[#allocation5 + $0x17c] sm:$0xf]
    %v211 = vld [vmem:[#allocation5 + $0x180] sm:$0xf]
    %v212 = vld [vmem:[#allocation5 + $0x184] sm:$0xf]
    %v213 = vld [vmem:[#allocation5 + $0x188] sm:$0xf]
    %v214 = vld [vmem:[#allocation5 + $0x18c] sm:$0xf]
    %v215 = vld [vmem:[#allocation5 + $0x190] sm:$0xf]
    %v216 = vld [vmem:[#allocation5 + $0x194] sm:$0xf]
    %v217 = vld [vmem:[#allocation5 + $0x198] sm:$0xf]
    %v218 = vld [vmem:[#allocation5 + $0x19c] sm:$0xf]
    %v219 = vld [vmem:[#allocation5 + $0x1a0] sm:$0xf]
    %v220 = vld [vmem:[#allocation5 + $0x1a4] sm:$0xf]
    %v221 = vld [vmem:[#allocation5 + $0x1a8] sm:$0xf]
    %v222 = vld [vmem:[#allocation5 + $0x1ac] sm:$0xf]
    %v223 = vld [vmem:[#allocation5 + $0x1b0] sm:$0xf]
    %v224 = vld [vmem:[#allocation5 + $0x1b4] sm:$0xf]
    %v225 = vld [vmem:[#allocation5 + $0x1b8] sm:$0xf]
    %v226 = vld [vmem:[#allocation5 + $0x1bc] sm:$0xf]
    %v227 = vld [vmem:[#allocation5 + $0x1c0] sm:$0xf]
    %v228 = vld [vmem:[#allocation5 + $0x1c4] sm:$0xf]
    %v229 = vld [vmem:[#allocation5 + $0x1c8] sm:$0xf]
    %v230 = vld [vmem:[#allocation5 + $0x1cc] sm:$0xf]
    %v231 = vld [vmem:[#allocation5 + $0x1d0] sm:$0xf]
    %v232 = vld [vmem:[#allocation5 + $0x1d4] sm:$0xf]
    %v233 = vld [vmem:[#allocation5 + $0x1d8] sm:$0xf]
    %v234 = vld [vmem:[#allocation5 + $0x1dc] sm:$0xf]
    %v235 = vld [vmem:[#allocation5 + $0x1e0] sm:$0xf]
    %v236 = vld [vmem:[#allocation5 + $0x1e4] sm:$0xf]
    %v237 = vld [vmem:[#allocation5 + $0x1e8] sm:$0xf]
    %v238 = vld [vmem:[#allocation5 + $0x1ec] sm:$0xf]
    %v239 = vld [vmem:[#allocation5 + $0x1f0] sm:$0xf]
    %v240 = vld [vmem:[#allocation5 + $0x1f4] sm:$0xf]
    %v241 = vld [vmem:[#allocation5 + $0x1f8] sm:$0xf]
    %v242 = vld [vmem:[#allocation5 + $0x1fc] sm:$0xf]
    %v243 = vld [vmem:[%s2] sm:$0x1]
    %v245 = vlaneseq
    %v246 = vshrl.u32 %v245, 7
    %v247 = vsub.s32 0, %v246
    %v248 = vrot.slane %v243, %v247
    %v378 = vunpack.c.l.b16 %v115
    %v379 = vunpack.c.l.b16 %v116
    %v380 = vunpack.c.l.b16 %v117
    %v381 = vunpack.c.l.b16 %v118
    %v382 = vunpack.c.l.b16 %v119
    %v383 = vunpack.c.l.b16 %v120
    %v384 = vunpack.c.l.b16 %v121
    %v385 = vunpack.c.l.b16 %v122
    %v386 = vunpack.c.l.b16 %v123
    %v387 = vunpack.c.l.b16 %v124
    %v388 = vunpack.c.l.b16 %v125
    %v389 = vunpack.c.l.b16 %v126
    %v390 = vunpack.c.l.b16 %v127
    %v391 = vunpack.c.l.b16 %v128
    %v392 = vunpack.c.l.b16 %v129
    %v393 = vunpack.c.l.b16 %v130
    %v394 = vunpack.c.l.b16 %v131
    %v395 = vunpack.c.l.b16 %v132
    %v396 = vunpack.c.l.b16 %v133
    %v397 = vunpack.c.l.b16 %v134
    %v398 = vunpack.c.l.b16 %v135
    %v399 = vunpack.c.l.b16 %v136
    %v400 = vunpack.c.l.b16 %v137
    %v401 = vunpack.c.l.b16 %v138
    %v402 = vunpack.c.l.b16 %v139
    %v403 = vunpack.c.l.b16 %v140
    %v404 = vunpack.c.l.b16 %v141
    %v405 = vunpack.c.l.b16 %v142
    %v406 = vunpack.c.l.b16 %v143
    %v407 = vunpack.c.l.b16 %v144
    %v408 = vunpack.c.l.b16 %v145
    %v409 = vunpack.c.l.b16 %v146
    %v410 = vunpack.c.l.b16 %v147
    %v411 = vunpack.c.l.b16 %v148
    %v412 = vunpack.c.l.b16 %v149
    %v413 = vunpack.c.l.b16 %v150
    %v414 = vunpack.c.l.b16 %v151
    %v415 = vunpack.c.l.b16 %v152
    %v416 = vunpack.c.l.b16 %v153
    %v417 = vunpack.c.l.b16 %v154
    %v418 = vunpack.c.l.b16 %v155
    %v419 = vunpack.c.l.b16 %v156
    %v420 = vunpack.c.l.b16 %v157
    %v421 = vunpack.c.l.b16 %v158
    %v422 = vunpack.c.l.b16 %v159
    %v423 = vunpack.c.l.b16 %v160
    %v424 = vunpack.c.l.b16 %v161
    %v425 = vunpack.c.l.b16 %v162
    %v426 = vunpack.c.l.b16 %v163
    %v427 = vunpack.c.l.b16 %v164
    %v428 = vunpack.c.l.b16 %v165
    %v429 = vunpack.c.l.b16 %v166
    %v430 = vunpack.c.l.b16 %v167
    %v431 = vunpack.c.l.b16 %v168
    %v432 = vunpack.c.l.b16 %v169
    %v433 = vunpack.c.l.b16 %v170
    %v434 = vunpack.c.l.b16 %v171
    %v435 = vunpack.c.l.b16 %v172
    %v436 = vunpack.c.l.b16 %v173
    %v437 = vunpack.c.l.b16 %v174
    %v438 = vunpack.c.l.b16 %v175
    %v439 = vunpack.c.l.b16 %v176
    %v440 = vunpack.c.l.b16 %v177
    %v441 = vunpack.c.l.b16 %v178
    %v442 = vunpack.c.l.b16 %v179
    %v443 = vunpack.c.l.b16 %v180
    %v444 = vunpack.c.l.b16 %v181
    %v445 = vunpack.c.l.b16 %v182
    %v446 = vunpack.c.l.b16 %v183
    %v447 = vunpack.c.l.b16 %v184
    %v448 = vunpack.c.l.b16 %v185
    %v449 = vunpack.c.l.b16 %v186
    %v450 = vunpack.c.l.b16 %v187
    %v451 = vunpack.c.l.b16 %v188
    %v452 = vunpack.c.l.b16 %v189
    %v453 = vunpack.c.l.b16 %v190
    %v454 = vunpack.c.l.b16 %v191
    %v455 = vunpack.c.l.b16 %v192
    %v456 = vunpack.c.l.b16 %v193
    %v457 = vunpack.c.l.b16 %v194
    %v458 = vunpack.c.l.b16 %v195
    %v459 = vunpack.c.l.b16 %v196
    %v460 = vunpack.c.l.b16 %v197
    %v461 = vunpack.c.l.b16 %v198
    %v462 = vunpack.c.l.b16 %v199
    %v463 = vunpack.c.l.b16 %v200
    %v464 = vunpack.c.l.b16 %v201
    %v465 = vunpack.c.l.b16 %v202
    %v466 = vunpack.c.l.b16 %v203
    %v467 = vunpack.c.l.b16 %v204
    %v468 = vunpack.c.l.b16 %v205
    %v469 = vunpack.c.l.b16 %v206
    %v470 = vunpack.c.l.b16 %v207
    %v471 = vunpack.c.l.b16 %v208
    %v472 = vunpack.c.l.b16 %v209
    %v473 = vunpack.c.l.b16 %v210
    %v474 = vunpack.c.l.b16 %v211
    %v475 = vunpack.c.l.b16 %v212
    %v476 = vunpack.c.l.b16 %v213
    %v477 = vunpack.c.l.b16 %v214
    %v478 = vunpack.c.l.b16 %v215
    %v479 = vunpack.c.l.b16 %v216
    %v480 = vunpack.c.l.b16 %v217
    %v481 = vunpack.c.l.b16 %v218
    %v482 = vunpack.c.l.b16 %v219
    %v483 = vunpack.c.l.b16 %v220
    %v484 = vunpack.c.l.b16 %v221
    %v485 = vunpack.c.l.b16 %v222
    %v486 = vunpack.c.l.b16 %v223
    %v487 = vunpack.c.l.b16 %v224
    %v488 = vunpack.c.l.b16 %v225
    %v489 = vunpack.c.l.b16 %v226
    %v490 = vunpack.c.l.b16 %v227
    %v491 = vunpack.c.l.b16 %v228
    %v492 = vunpack.c.l.b16 %v229
    %v493 = vunpack.c.l.b16 %v230
    %v494 = vunpack.c.l.b16 %v231
    %v495 = vunpack.c.l.b16 %v232
    %v496 = vunpack.c.l.b16 %v233
    %v497 = vunpack.c.l.b16 %v234
    %v498 = vunpack.c.l.b16 %v235
    %v499 = vunpack.c.l.b16 %v236
    %v500 = vunpack.c.l.b16 %v237
    %v501 = vunpack.c.l.b16 %v238
    %v502 = vunpack.c.l.b16 %v239
    %v503 = vunpack.c.l.b16 %v240
    %v504 = vunpack.c.l.b16 %v241
    %v505 = vunpack.c.l.b16 %v242
    %v506 = vpack.c.b16 %v379, %v378
    %v507 = vpack.c.b16 %v381, %v380
    %v508 = vpack.c.b16 %v383, %v382
    %v509 = vpack.c.b16 %v385, %v384
    %v510 = vpack.c.b16 %v387, %v386
    %v511 = vpack.c.b16 %v389, %v388
    %v512 = vpack.c.b16 %v391, %v390
    %v513 = vpack.c.b16 %v393, %v392
    %v514 = vpack.c.b16 %v395, %v394
    %v515 = vpack.c.b16 %v397, %v396
    %v516 = vpack.c.b16 %v399, %v398
    %v517 = vpack.c.b16 %v401, %v400
    %v518 = vpack.c.b16 %v403, %v402
    %v519 = vpack.c.b16 %v405, %v404
    %v520 = vpack.c.b16 %v407, %v406
    %v521 = vpack.c.b16 %v409, %v408
    %v522 = vpack.c.b16 %v411, %v410
    %v523 = vpack.c.b16 %v413, %v412
    %v524 = vpack.c.b16 %v415, %v414
    %v525 = vpack.c.b16 %v417, %v416
    %v526 = vpack.c.b16 %v419, %v418
    %v527 = vpack.c.b16 %v421, %v420
    %v528 = vpack.c.b16 %v423, %v422
    %v529 = vpack.c.b16 %v425, %v424
    %v530 = vpack.c.b16 %v427, %v426
    %v531 = vpack.c.b16 %v429, %v428
    %v532 = vpack.c.b16 %v431, %v430
    %v533 = vpack.c.b16 %v433, %v432
    %v534 = vpack.c.b16 %v435, %v434
    %v535 = vpack.c.b16 %v437, %v436
    %v536 = vpack.c.b16 %v439, %v438
    %v537 = vpack.c.b16 %v441, %v440
    %v538 = vpack.c.b16 %v443, %v442
    %v539 = vpack.c.b16 %v445, %v444
    %v540 = vpack.c.b16 %v447, %v446
    %v541 = vpack.c.b16 %v449, %v448
    %v542 = vpack.c.b16 %v451, %v450
    %v543 = vpack.c.b16 %v453, %v452
    %v544 = vpack.c.b16 %v455, %v454
    %v545 = vpack.c.b16 %v457, %v456
    %v546 = vpack.c.b16 %v459, %v458
    %v547 = vpack.c.b16 %v461, %v460
    %v548 = vpack.c.b16 %v463, %v462
    %v549 = vpack.c.b16 %v465, %v464
    %v550 = vpack.c.b16 %v467, %v466
    %v551 = vpack.c.b16 %v469, %v468
    %v552 = vpack.c.b16 %v471, %v470
    %v553 = vpack.c.b16 %v473, %v472
    %v554 = vpack.c.b16 %v475, %v474
    %v555 = vpack.c.b16 %v477, %v476
    %v556 = vpack.c.b16 %v479, %v478
    %v557 = vpack.c.b16 %v481, %v480
    %v558 = vpack.c.b16 %v483, %v482
    %v559 = vpack.c.b16 %v485, %v484
    %v560 = vpack.c.b16 %v487, %v486
    %v561 = vpack.c.b16 %v489, %v488
    %v562 = vpack.c.b16 %v491, %v490
    %v563 = vpack.c.b16 %v493, %v492
    %v564 = vpack.c.b16 %v495, %v494
    %v565 = vpack.c.b16 %v497, %v496
    %v566 = vpack.c.b16 %v499, %v498
    %v567 = vpack.c.b16 %v501, %v500
    %v568 = vpack.c.b16 %v503, %v502
    %v569 = vpack.c.b16 %v505, %v504
    %634 = vmatprep.subr.bf16.mxu0 0
    %635 = vmatpush1.bf16.msra.mxu0 %v506
    %636 = vmatprep.subr.bf16.mxu0 0
    %637 = vmatpush1.bf16.msra.mxu0 %v507
    %638 = vmatprep.subr.bf16.mxu0 0
    %639 = vmatpush1.bf16.msra.mxu0 %v508
    %640 = vmatprep.subr.bf16.mxu0 0
    %641 = vmatpush1.bf16.msra.mxu0 %v509
    %642 = vmatprep.subr.bf16.mxu0 0
    %643 = vmatpush1.bf16.msra.mxu0 %v510
    %644 = vmatprep.subr.bf16.mxu0 0
    %645 = vmatpush1.bf16.msra.mxu0 %v511
    %646 = vmatprep.subr.bf16.mxu0 0
    %647 = vmatpush1.bf16.msra.mxu0 %v512
    %648 = vmatprep.subr.bf16.mxu0 0
    %649 = vmatpush1.bf16.msra.mxu0 %v513
    %650 = vmatprep.subr.bf16.mxu0 0
    %651 = vmatpush1.bf16.msra.mxu0 %v514
    %652 = vmatprep.subr.bf16.mxu0 0
    %653 = vmatpush1.bf16.msra.mxu0 %v515
    %654 = vmatprep.subr.bf16.mxu0 0
    %655 = vmatpush1.bf16.msra.mxu0 %v516
    %656 = vmatprep.subr.bf16.mxu0 0
    %657 = vmatpush1.bf16.msra.mxu0 %v517
    %658 = vmatprep.subr.bf16.mxu0 0
    %659 = vmatpush1.bf16.msra.mxu0 %v518
    %660 = vmatprep.subr.bf16.mxu0 0
    %661 = vmatpush1.bf16.msra.mxu0 %v519
    %662 = vmatprep.subr.bf16.mxu0 0
    %663 = vmatpush1.bf16.msra.mxu0 %v520
    %664 = vmatprep.subr.bf16.mxu0 0
    %665 = vmatpush1.bf16.msra.mxu0 %v521
    %666 = vmatprep.mubr.bf16.mxu0 %v108
    %667 = vmatmul.mubr.bf16.gmra.mrb[0].mxu0 %v107
    %v668 = vpop.f32.mrb[0].mxu0
    %v669 = vadd.f32 %v248, %v668
    %v670 = vpop.f32.mrb[0].mxu0
    %v671 = vpop.f32.mrb[0].mxu0
    %v672 = vpop.f32.mrb[0].mxu0
    %673 = vdwg.mxu0
    %674 = vmatprep.subr.bf16.mxu0 0
    %675 = vmatpush1.bf16.msra.mxu0 %v522
    %676 = vmatprep.subr.bf16.mxu0 0
    %677 = vmatpush1.bf16.msra.mxu0 %v523
    %678 = vmatprep.subr.bf16.mxu0 0
    %679 = vmatpush1.bf16.msra.mxu0 %v524
    %680 = vmatprep.subr.bf16.mxu0 0
    %681 = vmatpush1.bf16.msra.mxu0 %v525
    %682 = vmatprep.subr.bf16.mxu0 0
    %683 = vmatpush1.bf16.msra.mxu0 %v526
    %684 = vmatprep.subr.bf16.mxu0 0
    %685 = vmatpush1.bf16.msra.mxu0 %v527
    %686 = vmatprep.subr.bf16.mxu0 0
    %687 = vmatpush1.bf16.msra.mxu0 %v528
    %688 = vmatprep.subr.bf16.mxu0 0
    %689 = vmatpush1.bf16.msra.mxu0 %v529
    %690 = vmatprep.subr.bf16.mxu0 0
    %691 = vmatpush1.bf16.msra.mxu0 %v530
    %692 = vmatprep.subr.bf16.mxu0 0
    %693 = vmatpush1.bf16.msra.mxu0 %v531
    %694 = vmatprep.subr.bf16.mxu0 0
    %695 = vmatpush1.bf16.msra.mxu0 %v532
    %696 = vmatprep.subr.bf16.mxu0 0
    %697 = vmatpush1.bf16.msra.mxu0 %v533
    %698 = vmatprep.subr.bf16.mxu0 0
    %699 = vmatpush1.bf16.msra.mxu0 %v534
    %700 = vmatprep.subr.bf16.mxu0 0
    %701 = vmatpush1.bf16.msra.mxu0 %v535
    %702 = vmatprep.subr.bf16.mxu0 0
    %703 = vmatpush1.bf16.msra.mxu0 %v536
    %704 = vmatprep.subr.bf16.mxu0 0
    %705 = vmatpush1.bf16.msra.mxu0 %v537
    %706 = vmatprep.mubr.bf16.mxu0 %v110
    %707 = vmatmul.mubr.bf16.gmra.mrb[0].mxu0 %v109
    %v708 = vpop.f32.mrb[0].mxu0
    %v709 = vadd.f32 %v669, %v708
    %v710 = vpop.f32.mrb[0].mxu0
    %v711 = vpop.f32.mrb[0].mxu0
    %v712 = vpop.f32.mrb[0].mxu0
    %713 = vdwg.mxu0
    %714 = vmatprep.subr.bf16.mxu0 0
    %715 = vmatpush1.bf16.msra.mxu0 %v538
    %716 = vmatprep.subr.bf16.mxu0 0
    %717 = vmatpush1.bf16.msra.mxu0 %v539
    %718 = vmatprep.subr.bf16.mxu0 0
    %719 = vmatpush1.bf16.msra.mxu0 %v540
    %720 = vmatprep.subr.bf16.mxu0 0
    %721 = vmatpush1.bf16.msra.mxu0 %v541
    %722 = vmatprep.subr.bf16.mxu0 0
    %723 = vmatpush1.bf16.msra.mxu0 %v542
    %724 = vmatprep.subr.bf16.mxu0 0
    %725 = vmatpush1.bf16.msra.mxu0 %v543
    %726 = vmatprep.subr.bf16.mxu0 0
    %727 = vmatpush1.bf16.msra.mxu0 %v544
    %728 = vmatprep.subr.bf16.mxu0 0
    %729 = vmatpush1.bf16.msra.mxu0 %v545
    %730 = vmatprep.subr.bf16.mxu0 0
    %731 = vmatpush1.bf16.msra.mxu0 %v546
    %732 = vmatprep.subr.bf16.mxu0 0
    %733 = vmatpush1.bf16.msra.mxu0 %v547
    %734 = vmatprep.subr.bf16.mxu0 0
    %735 = vmatpush1.bf16.msra.mxu0 %v548
    %736 = vmatprep.subr.bf16.mxu0 0
    %737 = vmatpush1.bf16.msra.mxu0 %v549
    %738 = vmatprep.subr.bf16.mxu0 0
    %739 = vmatpush1.bf16.msra.mxu0 %v550
    %740 = vmatprep.subr.bf16.mxu0 0
    %741 = vmatpush1.bf16.msra.mxu0 %v551
    %742 = vmatprep.subr.bf16.mxu0 0
    %743 = vmatpush1.bf16.msra.mxu0 %v552
    %744 = vmatprep.subr.bf16.mxu0 0
    %745 = vmatpush1.bf16.msra.mxu0 %v553
    %746 = vmatprep.mubr.bf16.mxu0 %v112
    %747 = vmatmul.mubr.bf16.gmra.mrb[0].mxu0 %v111
    %v748 = vpop.f32.mrb[0].mxu0
    %v749 = vadd.f32 %v709, %v748
    %v750 = vpop.f32.mrb[0].mxu0
    %v751 = vpop.f32.mrb[0].mxu0
    %v752 = vpop.f32.mrb[0].mxu0
    %753 = vdwg.mxu0
    %754 = vmatprep.subr.bf16.mxu0 0
    %755 = vmatpush1.bf16.msra.mxu0 %v554
    %756 = vmatprep.subr.bf16.mxu0 0
    %757 = vmatpush1.bf16.msra.mxu0 %v555
    %758 = vmatprep.subr.bf16.mxu0 0
    %759 = vmatpush1.bf16.msra.mxu0 %v556
    %760 = vmatprep.subr.bf16.mxu0 0
    %761 = vmatpush1.bf16.msra.mxu0 %v557
    %762 = vmatprep.subr.bf16.mxu0 0
    %763 = vmatpush1.bf16.msra.mxu0 %v558
    %764 = vmatprep.subr.bf16.mxu0 0
    %765 = vmatpush1.bf16.msra.mxu0 %v559
    %766 = vmatprep.subr.bf16.mxu0 0
    %767 = vmatpush1.bf16.msra.mxu0 %v560
    %768 = vmatprep.subr.bf16.mxu0 0
    %769 = vmatpush1.bf16.msra.mxu0 %v561
    %770 = vmatprep.subr.bf16.mxu0 0
    %771 = vmatpush1.bf16.msra.mxu0 %v562
    %772 = vmatprep.subr.bf16.mxu0 0
    %773 = vmatpush1.bf16.msra.mxu0 %v563
    %774 = vmatprep.subr.bf16.mxu0 0
    %775 = vmatpush1.bf16.msra.mxu0 %v564
    %776 = vmatprep.subr.bf16.mxu0 0
    %777 = vmatpush1.bf16.msra.mxu0 %v565
    %778 = vmatprep.subr.bf16.mxu0 0
    %779 = vmatpush1.bf16.msra.mxu0 %v566
    %780 = vmatprep.subr.bf16.mxu0 0
    %781 = vmatpush1.bf16.msra.mxu0 %v567
    %782 = vmatprep.subr.bf16.mxu0 0
    %783 = vmatpush1.bf16.msra.mxu0 %v568
    %784 = vmatprep.subr.bf16.mxu0 0
    %785 = vmatpush1.bf16.msra.mxu0 %v569
    %786 = vmatprep.mubr.bf16.mxu0 %v114
    %787 = vmatmul.mubr.bf16.gmra.mrb[0].mxu0 %v113
    %v788 = vpop.f32.mrb[0].mxu0
    %v789 = vadd.f32 %v749, %v788
    %v790 = vpop.f32.mrb[0].mxu0
    %v791 = vpop.f32.mrb[0].mxu0
    %v792 = vpop.f32.mrb[0].mxu0
    %793 = vdwg.mxu0
    %v794 = vpack.c.bf16 %v789, %v789
    %v795 = vld [vmem:[#allocation7] sm:$0xff]
    %v796 = vld [vmem:[#allocation7 + $0x8] sm:$0xff]
    %v797 = vld [vmem:[#allocation7 + $0x10] sm:$0xff]
    %v798 = vld [vmem:[#allocation7 + $0x18] sm:$0xff]
    %v799 = vld [vmem:[#allocation7 + $0x20] sm:$0xff]
    %v800 = vld [vmem:[#allocation7 + $0x28] sm:$0xff]
    %v801 = vld [vmem:[#allocation7 + $0x30] sm:$0xff]
    %v802 = vld [vmem:[#allocation7 + $0x38] sm:$0xff]
    %v803 = vld [vmem:[#allocation7 + $0x40] sm:$0xff]
    %v804 = vld [vmem:[#allocation7 + $0x48] sm:$0xff]
    %v805 = vld [vmem:[#allocation7 + $0x50] sm:$0xff]
    %v806 = vld [vmem:[#allocation7 + $0x58] sm:$0xff]
    %v807 = vld [vmem:[#allocation7 + $0x60] sm:$0xff]
    %v808 = vld [vmem:[#allocation7 + $0x68] sm:$0xff]
    %v809 = vld [vmem:[#allocation7 + $0x70] sm:$0xff]
    %v810 = vld [vmem:[#allocation7 + $0x78] sm:$0xff]
    %v811 = vld [vmem:[#allocation7 + $0x80] sm:$0xff]
    %v812 = vld [vmem:[#allocation7 + $0x88] sm:$0xff]
    %v813 = vld [vmem:[#allocation7 + $0x90] sm:$0xff]
    %v814 = vld [vmem:[#allocation7 + $0x98] sm:$0xff]
    %v815 = vld [vmem:[#allocation7 + $0xa0] sm:$0xff]
    %v816 = vld [vmem:[#allocation7 + $0xa8] sm:$0xff]
    %v817 = vld [vmem:[#allocation7 + $0xb0] sm:$0xff]
    %v818 = vld [vmem:[#allocation7 + $0xb8] sm:$0xff]
    %v819 = vld [vmem:[#allocation7 + $0xc0] sm:$0xff]
    %v820 = vld [vmem:[#allocation7 + $0xc8] sm:$0xff]
    %v821 = vld [vmem:[#allocation7 + $0xd0] sm:$0xff]
    %v822 = vld [vmem:[#allocation7 + $0xd8] sm:$0xff]
    %v823 = vld [vmem:[#allocation7 + $0xe0] sm:$0xff]
    %v824 = vld [vmem:[#allocation7 + $0xe8] sm:$0xff]
    %v825 = vld [vmem:[#allocation7 + $0xf0] sm:$0xff]
    %v826 = vld [vmem:[#allocation7 + $0xf8] sm:$0xff]
    %v827 = vld [vmem:[#allocation7 + $0x100] sm:$0xff]
    %v828 = vld [vmem:[#allocation7 + $0x108] sm:$0xff]
    %v829 = vld [vmem:[#allocation7 + $0x110] sm:$0xff]
    %v830 = vld [vmem:[#allocation7 + $0x118] sm:$0xff]
    %v831 = vld [vmem:[#allocation7 + $0x120] sm:$0xff]
    %v832 = vld [vmem:[#allocation7 + $0x128] sm:$0xff]
    %v833 = vld [vmem:[#allocation7 + $0x130] sm:$0xff]
    %v834 = vld [vmem:[#allocation7 + $0x138] sm:$0xff]
    %v835 = vld [vmem:[#allocation7 + $0x140] sm:$0xff]
    %v836 = vld [vmem:[#allocation7 + $0x148] sm:$0xff]
    %v837 = vld [vmem:[#allocation7 + $0x150] sm:$0xff]
    %v838 = vld [vmem:[#allocation7 + $0x158] sm:$0xff]
    %v839 = vld [vmem:[#allocation7 + $0x160] sm:$0xff]
    %v840 = vld [vmem:[#allocation7 + $0x168] sm:$0xff]
    %v841 = vld [vmem:[#allocation7 + $0x170] sm:$0xff]
    %v842 = vld [vmem:[#allocation7 + $0x178] sm:$0xff]
    %v843 = vld [vmem:[#allocation7 + $0x180] sm:$0xff]
    %v844 = vld [vmem:[#allocation7 + $0x188] sm:$0xff]
    %v845 = vld [vmem:[#allocation7 + $0x190] sm:$0xff]
    %v846 = vld [vmem:[#allocation7 + $0x198] sm:$0xff]
    %v847 = vld [vmem:[#allocation7 + $0x1a0] sm:$0xff]
    %v848 = vld [vmem:[#allocation7 + $0x1a8] sm:$0xff]
    %v849 = vld [vmem:[#allocation7 + $0x1b0] sm:$0xff]
    %v850 = vld [vmem:[#allocation7 + $0x1b8] sm:$0xff]
    %v851 = vld [vmem:[#allocation7 + $0x1c0] sm:$0xff]
    %v852 = vld [vmem:[#allocation7 + $0x1c8] sm:$0xff]
    %v853 = vld [vmem:[#allocation7 + $0x1d0] sm:$0xff]
    %v854 = vld [vmem:[#allocation7 + $0x1d8] sm:$0xff]
    %v855 = vld [vmem:[#allocation7 + $0x1e0] sm:$0xff]
    %v856 = vld [vmem:[#allocation7 + $0x1e8] sm:$0xff]
    %v857 = vld [vmem:[#allocation7 + $0x1f0] sm:$0xff]
    %v858 = vld [vmem:[#allocation7 + $0x1f8] sm:$0xff]
    %v859 = vld [vmem:[%s4] sm:$0xff]
    %v861 = vlaneseq
    %v862 = vshrl.u32 %v861, 7
    %v863 = vsub.s32 0, %v862
    %v864 = vrot.slane %v859, %v863
    %v865 = vlaneseq
    %v866 = vshrl.u32 %v865, 7
    %v867 = vsub.s32 1, %v866
    %v868 = vrot.slane %v859, %v867
    %v869 = vlaneseq
    %v870 = vshrl.u32 %v869, 7
    %v871 = vsub.s32 2, %v870
    %v872 = vrot.slane %v859, %v871
    %v873 = vlaneseq
    %v874 = vshrl.u32 %v873, 7
    %v875 = vsub.s32 3, %v874
    %v876 = vrot.slane %v859, %v875
    %v877 = vlaneseq
    %v878 = vshrl.u32 %v877, 7
    %v879 = vsub.s32 4, %v878
    %v880 = vrot.slane %v859, %v879
    %v881 = vlaneseq
    %v882 = vshrl.u32 %v881, 7
    %v883 = vsub.s32 5, %v882
    %v884 = vrot.slane %v859, %v883
    %v885 = vlaneseq
    %v886 = vshrl.u32 %v885, 7
    %v887 = vsub.s32 6, %v886
    %v888 = vrot.slane %v859, %v887
    %v889 = vlaneseq
    %v890 = vshrl.u32 %v889, 7
    %v891 = vsub.s32 7, %v890
    %v892 = vrot.slane %v859, %v891
    %v965 = vunpack.c.l.b16 %v795
    %v966 = vunpack.c.h.b16 %v795
    %v967 = vunpack.c.l.b16 %v796
    %v968 = vunpack.c.h.b16 %v796
    %v969 = vunpack.c.l.b16 %v797
    %v970 = vunpack.c.h.b16 %v797
    %v971 = vunpack.c.l.b16 %v798
    %v972 = vunpack.c.h.b16 %v798
    %v973 = vunpack.c.l.b16 %v799
    %v974 = vunpack.c.h.b16 %v799
    %v975 = vunpack.c.l.b16 %v800
    %v976 = vunpack.c.h.b16 %v800
    %v977 = vunpack.c.l.b16 %v801
    %v978 = vunpack.c.h.b16 %v801
    %v979 = vunpack.c.l.b16 %v802
    %v980 = vunpack.c.h.b16 %v802
    %v981 = vunpack.c.l.b16 %v803
    %v982 = vunpack.c.h.b16 %v803
    %v983 = vunpack.c.l.b16 %v804
    %v984 = vunpack.c.h.b16 %v804
    %v985 = vunpack.c.l.b16 %v805
    %v986 = vunpack.c.h.b16 %v805
    %v987 = vunpack.c.l.b16 %v806
    %v988 = vunpack.c.h.b16 %v806
    %v989 = vunpack.c.l.b16 %v807
    %v990 = vunpack.c.h.b16 %v807
    %v991 = vunpack.c.l.b16 %v808
    %v992 = vunpack.c.h.b16 %v808
    %v993 = vunpack.c.l.b16 %v809
    %v994 = vunpack.c.h.b16 %v809
    %v995 = vunpack.c.l.b16 %v810
    %v996 = vunpack.c.h.b16 %v810
    %v997 = vunpack.c.l.b16 %v811
    %v998 = vunpack.c.h.b16 %v811
    %v999 = vunpack.c.l.b16 %v812
    %v1000 = vunpack.c.h.b16 %v812
    %v1001 = vunpack.c.l.b16 %v813
    %v1002 = vunpack.c.h.b16 %v813
    %v1003 = vunpack.c.l.b16 %v814
    %v1004 = vunpack.c.h.b16 %v814
    %v1005 = vunpack.c.l.b16 %v815
    %v1006 = vunpack.c.h.b16 %v815
    %v1007 = vunpack.c.l.b16 %v816
    %v1008 = vunpack.c.h.b16 %v816
    %v1009 = vunpack.c.l.b16 %v817
    %v1010 = vunpack.c.h.b16 %v817
    %v1011 = vunpack.c.l.b16 %v818
    %v1012 = vunpack.c.h.b16 %v818
    %v1013 = vunpack.c.l.b16 %v819
    %v1014 = vunpack.c.h.b16 %v819
    %v1015 = vunpack.c.l.b16 %v820
    %v1016 = vunpack.c.h.b16 %v820
    %v1017 = vunpack.c.l.b16 %v821
    %v1018 = vunpack.c.h.b16 %v821
    %v1019 = vunpack.c.l.b16 %v822
    %v1020 = vunpack.c.h.b16 %v822
    %v1021 = vunpack.c.l.b16 %v823
    %v1022 = vunpack.c.h.b16 %v823
    %v1023 = vunpack.c.l.b16 %v824
    %v1024 = vunpack.c.h.b16 %v824
    %v1025 = vunpack.c.l.b16 %v825
    %v1026 = vunpack.c.h.b16 %v825
    %v1027 = vunpack.c.l.b16 %v826
    %v1028 = vunpack.c.h.b16 %v826
    %v1029 = vunpack.c.l.b16 %v827
    %v1030 = vunpack.c.h.b16 %v827
    %v1031 = vunpack.c.l.b16 %v828
    %v1032 = vunpack.c.h.b16 %v828
    %v1033 = vunpack.c.l.b16 %v829
    %v1034 = vunpack.c.h.b16 %v829
    %v1035 = vunpack.c.l.b16 %v830
    %v1036 = vunpack.c.h.b16 %v830
    %v1037 = vunpack.c.l.b16 %v831
    %v1038 = vunpack.c.h.b16 %v831
    %v1039 = vunpack.c.l.b16 %v832
    %v1040 = vunpack.c.h.b16 %v832
    %v1041 = vunpack.c.l.b16 %v833
    %v1042 = vunpack.c.h.b16 %v833
    %v1043 = vunpack.c.l.b16 %v834
    %v1044 = vunpack.c.h.b16 %v834
    %v1045 = vunpack.c.l.b16 %v835
    %v1046 = vunpack.c.h.b16 %v835
    %v1047 = vunpack.c.l.b16 %v836
    %v1048 = vunpack.c.h.b16 %v836
    %v1049 = vunpack.c.l.b16 %v837
    %v1050 = vunpack.c.h.b16 %v837
    %v1051 = vunpack.c.l.b16 %v838
    %v1052 = vunpack.c.h.b16 %v838
    %v1053 = vunpack.c.l.b16 %v839
    %v1054 = vunpack.c.h.b16 %v839
    %v1055 = vunpack.c.l.b16 %v840
    %v1056 = vunpack.c.h.b16 %v840
    %v1057 = vunpack.c.l.b16 %v841
    %v1058 = vunpack.c.h.b16 %v841
    %v1059 = vunpack.c.l.b16 %v842
    %v1060 = vunpack.c.h.b16 %v842
    %v1061 = vunpack.c.l.b16 %v843
    %v1062 = vunpack.c.h.b16 %v843
    %v1063 = vunpack.c.l.b16 %v844
    %v1064 = vunpack.c.h.b16 %v844
    %v1065 = vunpack.c.l.b16 %v845
    %v1066 = vunpack.c.h.b16 %v845
    %v1067 = vunpack.c.l.b16 %v846
    %v1068 = vunpack.c.h.b16 %v846
    %v1069 = vunpack.c.l.b16 %v847
    %v1070 = vunpack.c.h.b16 %v847
    %v1071 = vunpack.c.l.b16 %v848
    %v1072 = vunpack.c.h.b16 %v848
    %v1073 = vunpack.c.l.b16 %v849
    %v1074 = vunpack.c.h.b16 %v849
    %v1075 = vunpack.c.l.b16 %v850
    %v1076 = vunpack.c.h.b16 %v850
    %v1077 = vunpack.c.l.b16 %v851
    %v1078 = vunpack.c.h.b16 %v851
    %v1079 = vunpack.c.l.b16 %v852
    %v1080 = vunpack.c.h.b16 %v852
    %v1081 = vunpack.c.l.b16 %v853
    %v1082 = vunpack.c.h.b16 %v853
    %v1083 = vunpack.c.l.b16 %v854
    %v1084 = vunpack.c.h.b16 %v854
    %v1085 = vunpack.c.l.b16 %v855
    %v1086 = vunpack.c.h.b16 %v855
    %v1087 = vunpack.c.l.b16 %v856
    %v1088 = vunpack.c.h.b16 %v856
    %v1089 = vunpack.c.l.b16 %v857
    %v1090 = vunpack.c.h.b16 %v857
    %v1091 = vunpack.c.l.b16 %v858
    %v1092 = vunpack.c.h.b16 %v858
    %v1093 = vpack.c.b16 %v973, %v965
    %v1094 = vpack.c.b16 %v974, %v966
    %v1095 = vpack.c.b16 %v975, %v967
    %v1096 = vpack.c.b16 %v976, %v968
    %v1097 = vpack.c.b16 %v977, %v969
    %v1098 = vpack.c.b16 %v978, %v970
    %v1099 = vpack.c.b16 %v979, %v971
    %v1100 = vpack.c.b16 %v980, %v972
    %v1101 = vpack.c.b16 %v989, %v981
    %v1102 = vpack.c.b16 %v990, %v982
    %v1103 = vpack.c.b16 %v991, %v983
    %v1104 = vpack.c.b16 %v992, %v984
    %v1105 = vpack.c.b16 %v993, %v985
    %v1106 = vpack.c.b16 %v994, %v986
    %v1107 = vpack.c.b16 %v995, %v987
    %v1108 = vpack.c.b16 %v996, %v988
    %v1109 = vpack.c.b16 %v1005, %v997
    %v1110 = vpack.c.b16 %v1006, %v998
    %v1111 = vpack.c.b16 %v1007, %v999
    %v1112 = vpack.c.b16 %v1008, %v1000
    %v1113 = vpack.c.b16 %v1009, %v1001
    %v1114 = vpack.c.b16 %v1010, %v1002
    %v1115 = vpack.c.b16 %v1011, %v1003
    %v1116 = vpack.c.b16 %v1012, %v1004
    %v1117 = vpack.c.b16 %v1021, %v1013
    %v1118 = vpack.c.b16 %v1022, %v1014
    %v1119 = vpack.c.b16 %v1023, %v1015
    %v1120 = vpack.c.b16 %v1024, %v1016
    %v1121 = vpack.c.b16 %v1025, %v1017
    %v1122 = vpack.c.b16 %v1026, %v1018
    %v1123 = vpack.c.b16 %v1027, %v1019
    %v1124 = vpack.c.b16 %v1028, %v1020
    %v1125 = vpack.c.b16 %v1037, %v1029
    %v1126 = vpack.c.b16 %v1038, %v1030
    %v1127 = vpack.c.b16 %v1039, %v1031
    %v1128 = vpack.c.b16 %v1040, %v1032
    %v1129 = vpack.c.b16 %v1041, %v1033
    %v1130 = vpack.c.b16 %v1042, %v1034
    %v1131 = vpack.c.b16 %v1043, %v1035
    %v1132 = vpack.c.b16 %v1044, %v1036
    %v1133 = vpack.c.b16 %v1053, %v1045
    %v1134 = vpack.c.b16 %v1054, %v1046
    %v1135 = vpack.c.b16 %v1055, %v1047
    %v1136 = vpack.c.b16 %v1056, %v1048
    %v1137 = vpack.c.b16 %v1057, %v1049
    %v1138 = vpack.c.b16 %v1058, %v1050
    %v1139 = vpack.c.b16 %v1059, %v1051
    %v1140 = vpack.c.b16 %v1060, %v1052
    %v1141 = vpack.c.b16 %v1069, %v1061
    %v1142 = vpack.c.b16 %v1070, %v1062
    %v1143 = vpack.c.b16 %v1071, %v1063
    %v1144 = vpack.c.b16 %v1072, %v1064
    %v1145 = vpack.c.b16 %v1073, %v1065
    %v1146 = vpack.c.b16 %v1074, %v1066
    %v1147 = vpack.c.b16 %v1075, %v1067
    %v1148 = vpack.c.b16 %v1076, %v1068
    %v1149 = vpack.c.b16 %v1085, %v1077
    %v1150 = vpack.c.b16 %v1086, %v1078
    %v1151 = vpack.c.b16 %v1087, %v1079
    %v1152 = vpack.c.b16 %v1088, %v1080
    %v1153 = vpack.c.b16 %v1089, %v1081
    %v1154 = vpack.c.b16 %v1090, %v1082
    %v1155 = vpack.c.b16 %v1091, %v1083
    %v1156 = vpack.c.b16 %v1092, %v1084
    %1221 = vmatprep.subr.bf16.mxu0 %v1094
    %1222 = vmatpush1.bf16.msra.mxu0 %v1093
    %1223 = vmatprep.subr.bf16.mxu0 %v1102
    %1224 = vmatpush1.bf16.msra.mxu0 %v1101
    %1225 = vmatprep.subr.bf16.mxu0 %v1110
    %1226 = vmatpush1.bf16.msra.mxu0 %v1109
    %1227 = vmatprep.subr.bf16.mxu0 %v1118
    %1228 = vmatpush1.bf16.msra.mxu0 %v1117
    %1229 = vmatprep.subr.bf16.mxu0 %v1126
    %1230 = vmatpush1.bf16.msra.mxu0 %v1125
    %1231 = vmatprep.subr.bf16.mxu0 %v1134
    %1232 = vmatpush1.bf16.msra.mxu0 %v1133
    %1233 = vmatprep.subr.bf16.mxu0 %v1142
    %1234 = vmatpush1.bf16.msra.mxu0 %v1141
    %1235 = vmatprep.subr.bf16.mxu0 %v1150
    %1236 = vmatpush1.bf16.msra.mxu0 %v1149
    %1237 = vmatprep.subr.bf16.mxu0 0
    %1238 = vmatpush1.bf16.msra.mxu0 0
    %1239 = vmatprep.subr.bf16.mxu0 0
    %1240 = vmatpush1.bf16.msra.mxu0 0
    %1241 = vmatprep.subr.bf16.mxu0 0
    %1242 = vmatpush1.bf16.msra.mxu0 0
    %1243 = vmatprep.subr.bf16.mxu0 0
    %1244 = vmatpush1.bf16.msra.mxu0 0
    %1245 = vmatprep.subr.bf16.mxu0 0
    %1246 = vmatpush1.bf16.msra.mxu0 0
    %1247 = vmatprep.subr.bf16.mxu0 0
    %1248 = vmatpush1.bf16.msra.mxu0 0
    %1249 = vmatprep.subr.bf16.mxu0 0
    %1250 = vmatpush1.bf16.msra.mxu0 0
    %1251 = vmatprep.subr.bf16.mxu0 0
    %1252 = vmatpush1.bf16.msra.mxu0 0
    %1253 = vmatprep.mubr.bf16.mxu0 0
    %1254 = vmatmul.mubr.bf16.gmra.mrb[0].mxu0 %v794
    %v1255 = vpop.f32.mrb[0].mxu0
    %v1256 = vadd.f32 %v864, %v1255
    %v1257 = vpop.f32.mrb[0].mxu0
    %v1258 = vadd.f32 %v868, %v1257
    %v1259 = vpop.f32.mrb[0].mxu0
    %v1260 = vpop.f32.mrb[0].mxu0
    %1261 = vdwg.mxu0
    %1262 = vmatprep.subr.bf16.mxu0 %v1096
    %1263 = vmatpush1.bf16.msra.mxu0 %v1095
    %1264 = vmatprep.subr.bf16.mxu0 %v1104
    %1265 = vmatpush1.bf16.msra.mxu0 %v1103
    %1266 = vmatprep.subr.bf16.mxu0 %v1112
    %1267 = vmatpush1.bf16.msra.mxu0 %v1111
    %1268 = vmatprep.subr.bf16.mxu0 %v1120
    %1269 = vmatpush1.bf16.msra.mxu0 %v1119
    %1270 = vmatprep.subr.bf16.mxu0 %v1128
    %1271 = vmatpush1.bf16.msra.mxu0 %v1127
    %1272 = vmatprep.subr.bf16.mxu0 %v1136
    %1273 = vmatpush1.bf16.msra.mxu0 %v1135
    %1274 = vmatprep.subr.bf16.mxu0 %v1144
    %1275 = vmatpush1.bf16.msra.mxu0 %v1143
    %1276 = vmatprep.subr.bf16.mxu0 %v1152
    %1277 = vmatpush1.bf16.msra.mxu0 %v1151
    %1278 = vmatprep.subr.bf16.mxu0 0
    %1279 = vmatpush1.bf16.msra.mxu0 0
    %1280 = vmatprep.subr.bf16.mxu0 0
    %1281 = vmatpush1.bf16.msra.mxu0 0
    %1282 = vmatprep.subr.bf16.mxu0 0
    %1283 = vmatpush1.bf16.msra.mxu0 0
    %1284 = vmatprep.subr.bf16.mxu0 0
    %1285 = vmatpush1.bf16.msra.mxu0 0
    %1286 = vmatprep.subr.bf16.mxu0 0
    %1287 = vmatpush1.bf16.msra.mxu0 0
    %1288 = vmatprep.subr.bf16.mxu0 0
    %1289 = vmatpush1.bf16.msra.mxu0 0
    %1290 = vmatprep.subr.bf16.mxu0 0
    %1291 = vmatpush1.bf16.msra.mxu0 0
    %1292 = vmatprep.subr.bf16.mxu0 0
    %1293 = vmatpush1.bf16.msra.mxu0 0
    %1294 = vmatprep.mubr.bf16.mxu0 0
    %1295 = vmatmul.mubr.bf16.gmra.mrb[0].mxu0 %v794
    %v1296 = vpop.f32.mrb[0].mxu0
    %v1297 = vadd.f32 %v872, %v1296
    %v1298 = vpop.f32.mrb[0].mxu0
    %v1299 = vadd.f32 %v876, %v1298
    %v1300 = vpop.f32.mrb[0].mxu0
    %v1301 = vpop.f32.mrb[0].mxu0
    %1302 = vdwg.mxu0
    %1303 = vmatprep.subr.bf16.mxu0 %v1098
    %1304 = vmatpush1.bf16.msra.mxu0 %v1097
    %1305 = vmatprep.subr.bf16.mxu0 %v1106
    %1306 = vmatpush1.bf16.msra.mxu0 %v1105
    %1307 = vmatprep.subr.bf16.mxu0 %v1114
    %1308 = vmatpush1.bf16.msra.mxu0 %v1113
    %1309 = vmatprep.subr.bf16.mxu0 %v1122
    %1310 = vmatpush1.bf16.msra.mxu0 %v1121
    %1311 = vmatprep.subr.bf16.mxu0 %v1130
    %1312 = vmatpush1.bf16.msra.mxu0 %v1129
    %1313 = vmatprep.subr.bf16.mxu0 %v1138
    %1314 = vmatpush1.bf16.msra.mxu0 %v1137
    %1315 = vmatprep.subr.bf16.mxu0 %v1146
    %1316 = vmatpush1.bf16.msra.mxu0 %v1145
    %1317 = vmatprep.subr.bf16.mxu0 %v1154
    %1318 = vmatpush1.bf16.msra.mxu0 %v1153
    %1319 = vmatprep.subr.bf16.mxu0 0
    %1320 = vmatpush1.bf16.msra.mxu0 0
    %1321 = vmatprep.subr.bf16.mxu0 0
    %1322 = vmatpush1.bf16.msra.mxu0 0
    %1323 = vmatprep.subr.bf16.mxu0 0
    %1324 = vmatpush1.bf16.msra.mxu0 0
    %1325 = vmatprep.subr.bf16.mxu0 0
    %1326 = vmatpush1.bf16.msra.mxu0 0
    %1327 = vmatprep.subr.bf16.mxu0 0
    %1328 = vmatpush1.bf16.msra.mxu0 0
    %1329 = vmatprep.subr.bf16.mxu0 0
    %1330 = vmatpush1.bf16.msra.mxu0 0
    %1331 = vmatprep.subr.bf16.mxu0 0
    %1332 = vmatpush1.bf16.msra.mxu0 0
    %1333 = vmatprep.subr.bf16.mxu0 0
    %1334 = vmatpush1.bf16.msra.mxu0 0
    %1335 = vmatprep.mubr.bf16.mxu0 0
    %1336 = vmatmul.mubr.bf16.gmra.mrb[0].mxu0 %v794
    %v1337 = vpop.f32.mrb[0].mxu0
    %v1338 = vadd.f32 %v880, %v1337
    %v1339 = vpop.f32.mrb[0].mxu0
    %v1340 = vadd.f32 %v884, %v1339
    %v1341 = vpop.f32.mrb[0].mxu0
    %v1342 = vpop.f32.mrb[0].mxu0
    %1343 = vdwg.mxu0
    %1344 = vmatprep.subr.bf16.mxu0 %v1100
    %1345 = vmatpush1.bf16.msra.mxu0 %v1099
    %1346 = vmatprep.subr.bf16.mxu0 %v1108
    %1347 = vmatpush1.bf16.msra.mxu0 %v1107
    %1348 = vmatprep.subr.bf16.mxu0 %v1116
    %1349 = vmatpush1.bf16.msra.mxu0 %v1115
    %1350 = vmatprep.subr.bf16.mxu0 %v1124
    %1351 = vmatpush1.bf16.msra.mxu0 %v1123
    %1352 = vmatprep.subr.bf16.mxu0 %v1132
    %1353 = vmatpush1.bf16.msra.mxu0 %v1131
    %1354 = vmatprep.subr.bf16.mxu0 %v1140
    %1355 = vmatpush1.bf16.msra.mxu0 %v1139
    %1356 = vmatprep.subr.bf16.mxu0 %v1148
    %1357 = vmatpush1.bf16.msra.mxu0 %v1147
    %1358 = vmatprep.subr.bf16.mxu0 %v1156
    %1359 = vmatpush1.bf16.msra.mxu0 %v1155
    %1360 = vmatprep.subr.bf16.mxu0 0
    %1361 = vmatpush1.bf16.msra.mxu0 0
    %1362 = vmatprep.subr.bf16.mxu0 0
    %1363 = vmatpush1.bf16.msra.mxu0 0
    %1364 = vmatprep.subr.bf16.mxu0 0
    %1365 = vmatpush1.bf16.msra.mxu0 0
    %1366 = vmatprep.subr.bf16.mxu0 0
    %1367 = vmatpush1.bf16.msra.mxu0 0
    %1368 = vmatprep.subr.bf16.mxu0 0
    %1369 = vmatpush1.bf16.msra.mxu0 0
    %1370 = vmatprep.subr.bf16.mxu0 0
    %1371 = vmatpush1.bf16.msra.mxu0 0
    %1372 = vmatprep.subr.bf16.mxu0 0
    %1373 = vmatpush1.bf16.msra.mxu0 0
    %1374 = vmatprep.subr.bf16.mxu0 0
    %1375 = vmatpush1.bf16.msra.mxu0 0
    %1376 = vmatprep.mubr.bf16.mxu0 0
    %1377 = vmatmul.mubr.bf16.gmra.mrb[0].mxu0 %v794
    %v1378 = vpop.f32.mrb[0].mxu0
    %v1379 = vadd.f32 %v888, %v1378
    %v1380 = vpop.f32.mrb[0].mxu0
    %v1381 = vadd.f32 %v892, %v1380
    %v1382 = vpop.f32.mrb[0].mxu0
    %v1383 = vpop.f32.mrb[0].mxu0
    %1384 = vdwg.mxu0
    %v1393 = vcombine.low %v1256, %v1258
    %v1394 = vcombine.low %v1297, %v1299
    %v1396 = vunpack.c.l.s4 1983009808
    %v1397 = vunpack.c.0.s8 %v1396
    %v1398 = vlaneseq
    %v1399 = vshrl.u32 %v1398, 7
    %v1400 = vsub.s32 %v1397, %v1399
    %v1401 = vrot.slane %v1393, %v1400
    %v1403 = vunpack.c.l.s4 1983009808
    %v1404 = vunpack.c.0.s8 %v1403
    %v1405 = vlaneseq
    %v1406 = vshrl.u32 %v1405, 7
    %v1407 = vsub.s32 %v1404, %v1406
    %v1408 = vrot.slane %v1394, %v1407
    %v1409 = vcombine.low %v1401, %v1408
    %v1410 = vcombine.low %v1338, %v1340
    %v1411 = vcombine.low %v1379, %v1381
    %v1413 = vunpack.c.l.s4 1983009808
    %v1414 = vunpack.c.0.s8 %v1413
    %v1415 = vlaneseq
    %v1416 = vshrl.u32 %v1415, 7
    %v1417 = vsub.s32 %v1414, %v1416
    %v1418 = vrot.slane %v1410, %v1417
    %v1420 = vunpack.c.l.s4 1983009808
    %v1421 = vunpack.c.0.s8 %v1420
    %v1422 = vlaneseq
    %v1423 = vshrl.u32 %v1422, 7
    %v1424 = vsub.s32 %v1421, %v1423
    %v1425 = vrot.slane %v1411, %v1424
    %v1426 = vcombine.low %v1418, %v1425
    %1429 = vst [vmem:[#allocation8] sm:$0xff] %v1409
    %1430 = vst [vmem:[#allocation8 + $0x8] sm:$0xff] %v1426
    // Predicated region
    $region34: #{tpu_custom_call.1} parent=1 // pred_check
      _
    $region35: #{tpu_custom_call.1} parent=1 // pred_check_branch
      %1432 = sbr.rel (0) target = $region37
    $region36: #{tpu_custom_call.1} parent=1 // pred_region
      %s1434 = ssub.s32 256, 256
      %1435 = vsyncadd [#allocation4], %s1434
      %s1437 = sshll.u32 [#allocation8], 4
      %s1438 = int_to_ptr.vmem [resolvable:$true] %s1437
      %1440 = dma.vmem_to_hbm [thread:$0]  %s1438, 256, %s5, [#allocation4]
    $region37: #{tpu_custom_call.1} parent=1 // pred_fallthru
      _
    // Predicated region
    $region38: #{tpu_custom_call.1} parent=1 // pred_check
      _
    $region39: #{tpu_custom_call.1} parent=1 // pred_check_branch
      %1442 = sbr.rel (0) target = $region41
    $region40: #{tpu_custom_call.1} parent=1 // pred_region
      %1443 = dma.done [#allocation4], 256
    $region41: #{tpu_custom_call.1} parent=1 // pred_fallthru
      _
    %1444 = vsyncpa [#allocation3], 1
    %1445 = vsyncpa [#allocation6], 1
    %1446 = vsyncpa [#allocation4], 1

</llo_original>
